<compile_context>
chip_gen: v7x
topology: tpu7x:2x2x1
jax: 0.10.0
libtpu: 0.0.40
codegen_flags: <defaults>
</compile_context>

<pallas_src>
import functools

import jax
import jax.numpy as jnp
from jax.experimental import pallas as pl
from jax.experimental.pallas import tpu as pltpu

# -----------------------------------------------------------------------------
# Model hyper-parameters (the PyTorch module relies on a module-level
# `embedding_dim` global; we fix it here).
# -----------------------------------------------------------------------------
EMBEDDING_DIM = 64          # -> 2E = 128 (lane-aligned), 4E = 256
WORD_NUM = 128
USER_NUM = 50
ITEM_NUM = 60
BATCH = 8


# -----------------------------------------------------------------------------
# Pallas kernel: embedding gather (manual DMA) + all matmul/elementwise math.
# -----------------------------------------------------------------------------
def _cevncf_kernel(sampling, user_idx_ref, item_idx_ref, *refs):
    if sampling:
        (user_tab_ref, item_tab_ref, eps_ref,
         wlat_ref, blat_ref, wrat_ref, brat_ref, wheads_ref, bheads_ref,
         rating_ref, key_ref, recon_ref, mean_ref, logvar_ref,
         ubuf, ibuf, sems) = refs
    else:
        (user_tab_ref, item_tab_ref,
         wlat_ref, blat_ref, wrat_ref, brat_ref, wheads_ref, bheads_ref,
         rating_ref, key_ref, recon_ref, mean_ref, logvar_ref,
         ubuf, ibuf, sems) = refs
        eps_ref = None

    b_n = ubuf.shape[0]
    two_e = mean_ref.shape[1]
    w_num = key_ref.shape[1]

    # --- fused embedding gather: B row-DMAs from the HBM tables into VMEM ---
    copies = []
    for b in range(b_n):
        cu = pltpu.make_async_copy(
            user_tab_ref.at[pl.ds(user_idx_ref[b], 1), :],
            ubuf.at[pl.ds(b, 1), :],
            sems.at[0, b])
        ci = pltpu.make_async_copy(
            item_tab_ref.at[pl.ds(item_idx_ref[b], 1), :],
            ibuf.at[pl.ds(b, 1), :],
            sems.at[1, b])
        cu.start()
        ci.start()
        copies.append(cu)
        copies.append(ci)
    for c in copies:
        c.wait()

    emb = jnp.concatenate([ubuf[...], ibuf[...]], axis=1)          # (B, 2E)

    # --- latent layer: one (B,2E) @ (2E,4E) MXU pass ---
    latent_full = (
        jnp.dot(emb, wlat_ref[...], preferred_element_type=jnp.float32)
        + blat_ref[...]
    )
    mean = jnp.maximum(latent_full[:, :two_e], 0.0)
    logvar = jnp.tanh(latent_full[:, two_e:]) * 3.0

    # --- re-parameterization (only when sampling) ---
    if sampling:
        latent = mean + eps_ref[...] * jnp.exp(0.5 * logvar)
    else:
        latent = mean

    # --- packed heads: [keyphrase | reconstructed latent] in one MXU pass ---
    heads = (
        jnp.dot(latent, wheads_ref[...], preferred_element_type=jnp.float32)
        + bheads_ref[...]
    )
    key_ref[...] = heads[:, :w_num]
    recon_ref[...] = jnp.maximum(heads[:, w_num:], 0.0)

    # --- rating head on VPU/XLU (avoid a wasteful N=1 MXU pass) ---
    rating_ref[...] = (
        jnp.sum(latent * wrat_ref[...], axis=-1, keepdims=True) + brat_ref[0, 0]
    )

    mean_ref[...] = mean
    logvar_ref[...] = logvar


def _vmem_spec(shape):
    nd = len(shape)
    # index_map receives (grid_idx, user_ref, item_ref) because of scalar prefetch.
    return pl.BlockSpec(shape, lambda i, u, it, _nd=nd: (0,) * _nd)


@functools.partial(jax.jit, static_argnames=("sampling",))
def cevncf_forward(user, item, packed, epsilon=None, *, sampling=True):
    """Mirrors CEVNCFOrigin.forward.

    Returns (rating, keyphrase, reconstructed_latent, detached_latent, mean, logvar).
    """
    B = user.shape[0]
    two_e = 2 * EMBEDDING_DIM

    tensor_inputs = [packed["user_emb"], packed["item_emb"]]
    in_specs = [pl.BlockSpec(memory_space=pl.ANY),        # user table stays in HBM
                pl.BlockSpec(memory_space=pl.ANY)]        # item table stays in HBM
    if sampling:
        tensor_inputs.append(epsilon)
        in_specs.append(_vmem_spec(epsilon.shape))

    tensor_inputs += [
        packed["w_lat"], packed["b_lat"],
        packed["wrat_t"], packed["b_rat"],
        packed["w_heads"], packed["b_heads"],
    ]
    in_specs += [
        _vmem_spec(packed["w_lat"].shape),
        _vmem_spec(packed["b_lat"].shape),
        _vmem_spec(packed["wrat_t"].shape),
        pl.BlockSpec(memory_space=pltpu.SMEM),            # (1,1) rating bias
        _vmem_spec(packed["w_heads"].shape),
        _vmem_spec(packed["b_heads"].shape),
    ]

    out_shapes = (
        jax.ShapeDtypeStruct((B, 1), jnp.float32),         # rating
        jax.ShapeDtypeStruct((B, WORD_NUM), jnp.float32),  # keyphrase
        jax.ShapeDtypeStruct((B, two_e), jnp.float32),     # reconstructed_latent
        jax.ShapeDtypeStruct((B, two_e), jnp.float32),     # mean
        jax.ShapeDtypeStruct((B, two_e), jnp.float32),     # logvar
    )
    out_specs = [_vmem_spec(s.shape) for s in out_shapes]

    grid_spec = pltpu.PrefetchScalarGridSpec(
        num_scalar_prefetch=2,
        grid=(1,),
        in_specs=in_specs,
        out_specs=out_specs,
        scratch_shapes=[
            pltpu.VMEM((B, EMBEDDING_DIM), jnp.float32),   # gathered user rows
            pltpu.VMEM((B, EMBEDDING_DIM), jnp.float32),   # gathered item rows
            pltpu.SemaphoreType.DMA((2, B)),
        ],
    )

    rating, keyphrase, recon, mean, logvar = pl.pallas_call(
        functools.partial(_cevncf_kernel, sampling),
        out_shape=out_shapes,
        grid_spec=grid_spec,
        compiler_params=pltpu.CompilerParams(
            dimension_semantics=("arbitrary",)),
    )(user, item, *tensor_inputs)

    detached_latent = jax.lax.stop_gradient(mean)          # "mean.detach()"
    return rating, keyphrase, recon, detached_latent, mean, logvar


# -----------------------------------------------------------------------------
# One-time weight prep (inference / frozen weights): pack the keyphrase and
# reconstruction heads into one 256-wide matmul, transpose the rating weight
# for the VPU path, keep the rating bias as an SMEM scalar.
# -----------------------------------------------------------------------------
def pack_params(params):
    w_kr = params["w_key"] @ params["w_rec"]                      # (2E, 2E)
    b_kr = params["b_key"] @ params["w_rec"] + params["b_rec"]    # (1, 2E)
    return {
        "user_emb": params["user_emb"],
        "item_emb": params["item_emb"],
        "w_lat": params["w_lat"],
        "b_lat": params["b_lat"],
        "wrat_t": params["w_rat"].T,                              # (1, 2E)
        "b_rat": params["b_rat"].reshape(1, 1),                   # (1, 1)
        "w_heads": jnp.concatenate([params["w_key"], w_kr], axis=1),  # (2E, W+2E)
        "b_heads": jnp.concatenate([params["b_key"], b_kr], axis=1),  # (1, W+2E)
    }


# -----------------------------------------------------------------------------
# Deterministic parameter init (PyTorch-style: embeddings ~ N(0,1), Linear
# weights/biases ~ U(-1/sqrt(fan_in), 1/sqrt(fan_in))).
# -----------------------------------------------------------------------------
def init_params(key):
    ks = jax.random.split(key, 10)
    e, two_e, four_e, w = EMBEDDING_DIM, 2 * EMBEDDING_DIM, 4 * EMBEDDING_DIM, WORD_NUM

    def linear(kw, kb, fan_in, fan_out):
        bound = 1.0 / jnp.sqrt(fan_in)
        W = jax.random.uniform(kw, (fan_in, fan_out), jnp.float32, -bound, bound)
        b = jax.random.uniform(kb, (1, fan_out), jnp.float32, -bound, bound)
        return W, b

    w_lat, b_lat = linear(ks[2], ks[3], two_e, four_e)
    w_rat, b_rat = linear(ks[4], ks[5], two_e, 1)
    w_key, b_key = linear(ks[6], ks[7], two_e, w)
    w_rec, b_rec = linear(ks[8], ks[9], w, two_e)

    return {
        "user_emb": jax.random.normal(ks[0], (USER_NUM, e), jnp.float32),
        "item_emb": jax.random.normal(ks[1], (ITEM_NUM, e), jnp.float32),
        "w_lat": w_lat, "b_lat": b_lat,
        "w_rat": w_rat, "b_rat": b_rat,
        "w_key": w_key, "b_key": b_key,
        "w_rec": w_rec, "b_rec": b_rec,
    }


# -----------------------------------------------------------------------------
# Pure-JAX reference (original, un-packed computation order).
# -----------------------------------------------------------------------------
def cevncf_reference(user, item, params, epsilon, *, sampling=True):
    emb = jnp.concatenate(
        [params["user_emb"][user], params["item_emb"][item]], axis=1)
    latent_full = emb @ params["w_lat"] + params["b_lat"]
    two_e = 2 * EMBEDDING_DIM
    mean = jax.nn.relu(latent_full[:, :two_e])
    logvar = jnp.tanh(latent_full[:, two_e:]) * 3.0
    latent = mean + epsilon * jnp.exp(0.5 * logvar) if sampling else mean
    rating = latent @ params["w_rat"] + params["b_rat"]
    keyphrase = latent @ params["w_key"] + params["b_key"]
    recon = jax.nn.relu(keyphrase @ params["w_rec"] + params["b_rec"])
    return rating, keyphrase, recon, mean, mean, logvar


if __name__ == "__main__":
    key = jax.random.PRNGKey(0)
    k_param, k_user, k_item, k_eps = jax.random.split(key, 4)

    params = init_params(k_param)
    packed = pack_params(params)   # one-time weight prep

    user = jax.random.randint(k_user, (BATCH,), 0, USER_NUM, dtype=jnp.int32)
    item = jax.random.randint(k_item, (BATCH,), 0, ITEM_NUM, dtype=jnp.int32)
    # TODO(synk): epsilon (torch.randn_like inside forward) is taken as an
    # explicit input for determinism; could be generated in-kernel via pltpu.prng_*.
    epsilon = jax.random.normal(k_eps, (BATCH, 2 * EMBEDDING_DIM), jnp.float32)

    # sampling=True path
    outs = cevncf_forward(user, item, packed, epsilon, sampling=True)
    outs = jax.block_until_ready(outs)
    refs = cevncf_reference(user, item, params, epsilon, sampling=True)
    for o, r in zip(outs, refs):
        assert o.shape == r.shape, (o.shape, r.shape)
        assert float(jnp.max(jnp.abs(o - r))) < 2e-4

    # sampling=False path (latent = mean; epsilon not shipped at all)
    outs_ns = jax.block_until_ready(
        cevncf_forward(user, item, packed, sampling=False))
    refs_ns = cevncf_reference(user, item, params, epsilon, sampling=False)
    for o, r in zip(outs_ns, refs_ns):
        assert o.shape == r.shape, (o.shape, r.shape)
        assert float(jnp.max(jnp.abs(o - r))) < 2e-4

    print("KERNEL_OK")
</pallas_src>

<mosaic_0001>
module attributes {stable_mosaic.version = 11 : i64} {
  func.func @_cevncf_kernel(%arg0: i32, %arg1: memref<8xi32, #tpu.memory_space<smem>>, %arg2: memref<8xi32, #tpu.memory_space<smem>>, %arg3: memref<50x64xf32, #tpu.memory_space<any>>, %arg4: memref<60x64xf32, #tpu.memory_space<any>>, %arg5: memref<8x128xf32, #tpu.memory_space<vmem>>, %arg6: memref<128x256xf32, #tpu.memory_space<vmem>>, %arg7: memref<1x256xf32, #tpu.memory_space<vmem>>, %arg8: memref<1x128xf32, #tpu.memory_space<vmem>>, %arg9: memref<1x1xf32, #tpu.memory_space<smem>>, %arg10: memref<128x256xf32, #tpu.memory_space<vmem>>, %arg11: memref<1x256xf32, #tpu.memory_space<vmem>>, %arg12: memref<8x1xf32, #tpu.memory_space<vmem>>, %arg13: memref<8x128xf32, #tpu.memory_space<vmem>>, %arg14: memref<8x128xf32, #tpu.memory_space<vmem>>, %arg15: memref<8x128xf32, #tpu.memory_space<vmem>>, %arg16: memref<8x128xf32, #tpu.memory_space<vmem>>, %arg17: memref<8x64xf32, #tpu.memory_space<vmem>>, %arg18: memref<8x64xf32, #tpu.memory_space<vmem>>, %arg19: memref<2x8x!tpu.dma_semaphore, #tpu.memory_space<semaphore_mem>>) attributes {dimension_semantics = [#tpu.dimension_semantics<arbitrary>], iteration_bounds = array<i64: 1>, scalar_prefetch = 2 : i64, scratch_operands = 3 : i64, tpu.core_type = #tpu.core_type<tc>, window_params = [{}, {}, {pipeline_mode = #tpu.pipeline_mode<synchronous>, transform_indices = @transform_2, window_bounds = array<i64: 8, 128>}, {pipeline_mode = #tpu.pipeline_mode<synchronous>, transform_indices = @transform_3, window_bounds = array<i64: 128, 256>}, {pipeline_mode = #tpu.pipeline_mode<synchronous>, transform_indices = @transform_4, window_bounds = array<i64: 1, 256>}, {pipeline_mode = #tpu.pipeline_mode<synchronous>, transform_indices = @transform_5, window_bounds = array<i64: 1, 128>}, {transform_indices = @transform_6, window_bounds = array<i64: 1, 1>}, {pipeline_mode = #tpu.pipeline_mode<synchronous>, transform_indices = @transform_7, window_bounds = array<i64: 128, 256>}, {pipeline_mode = #tpu.pipeline_mode<synchronous>, transform_indices = @transform_8, window_bounds = array<i64: 1, 256>}, {pipeline_mode = #tpu.pipeline_mode<synchronous>, transform_indices = @transform_9, window_bounds = array<i64: 8, 1>}, {pipeline_mode = #tpu.pipeline_mode<synchronous>, transform_indices = @transform_10, window_bounds = array<i64: 8, 128>}, {pipeline_mode = #tpu.pipeline_mode<synchronous>, transform_indices = @transform_11, window_bounds = array<i64: 8, 128>}, {pipeline_mode = #tpu.pipeline_mode<synchronous>, transform_indices = @transform_12, window_bounds = array<i64: 8, 128>}, {pipeline_mode = #tpu.pipeline_mode<synchronous>, transform_indices = @transform_13, window_bounds = array<i64: 8, 128>}]} {
    %c0 = arith.constant 0 : index
    %0 = memref.load %arg1[%c0] : memref<8xi32, #tpu.memory_space<smem>>
    %c0_0 = arith.constant 0 : index
    %1 = memref.load %arg2[%c0_0] : memref<8xi32, #tpu.memory_space<smem>>
    %c0_i32 = arith.constant 0 : i32
    %c0_i32_1 = arith.constant 0 : i32
    %c0_i32_2 = arith.constant 0 : i32
    %2 = tpu.memref_slice %arg3[%0, %c0_i32_2] : memref<50x64xf32, #tpu.memory_space<any>> -> memref<1x64xf32, #tpu.memory_space<any>>
    %c0_i32_3 = arith.constant 0 : i32
    %c0_i32_4 = arith.constant 0 : i32
    %3 = tpu.memref_slice %arg17[%c0_i32_3, %c0_i32_4] : memref<8x64xf32, #tpu.memory_space<vmem>> -> memref<1x64xf32, #tpu.memory_space<vmem>>
    %4 = tpu.memref_slice %arg19[%c0_i32, %c0_i32_1] : memref<2x8x!tpu.dma_semaphore, #tpu.memory_space<semaphore_mem>> -> memref<1x1x!tpu.dma_semaphore, #tpu.memory_space<semaphore_mem>>
    %5 = tpu.memref_squeeze %4 : memref<1x1x!tpu.dma_semaphore, #tpu.memory_space<semaphore_mem>> -> memref<!tpu.dma_semaphore, #tpu.memory_space<semaphore_mem>>
    tpu.enqueue_dma source(%2 : memref<1x64xf32, #tpu.memory_space<any>>) target(%3 : memref<1x64xf32, #tpu.memory_space<vmem>>) target_semaphore(%5 : memref<!tpu.dma_semaphore, #tpu.memory_space<semaphore_mem>>)
    %c1_i32 = arith.constant 1 : i32
    %c0_i32_5 = arith.constant 0 : i32
    %c0_i32_6 = arith.constant 0 : i32
    %6 = tpu.memref_slice %arg4[%1, %c0_i32_6] : memref<60x64xf32, #tpu.memory_space<any>> -> memref<1x64xf32, #tpu.memory_space<any>>
    %c0_i32_7 = arith.constant 0 : i32
    %c0_i32_8 = arith.constant 0 : i32
    %7 = tpu.memref_slice %arg18[%c0_i32_7, %c0_i32_8] : memref<8x64xf32, #tpu.memory_space<vmem>> -> memref<1x64xf32, #tpu.memory_space<vmem>>
    %8 = tpu.memref_slice %arg19[%c1_i32, %c0_i32_5] : memref<2x8x!tpu.dma_semaphore, #tpu.memory_space<semaphore_mem>> -> memref<1x1x!tpu.dma_semaphore, #tpu.memory_space<semaphore_mem>>
    %9 = tpu.memref_squeeze %8 : memref<1x1x!tpu.dma_semaphore, #tpu.memory_space<semaphore_mem>> -> memref<!tpu.dma_semaphore, #tpu.memory_space<semaphore_mem>>
    tpu.enqueue_dma source(%6 : memref<1x64xf32, #tpu.memory_space<any>>) target(%7 : memref<1x64xf32, #tpu.memory_space<vmem>>) target_semaphore(%9 : memref<!tpu.dma_semaphore, #tpu.memory_space<semaphore_mem>>)
    %c1 = arith.constant 1 : index
    %10 = memref.load %arg1[%c1] : memref<8xi32, #tpu.memory_space<smem>>
    %c1_9 = arith.constant 1 : index
    %11 = memref.load %arg2[%c1_9] : memref<8xi32, #tpu.memory_space<smem>>
    %c0_i32_10 = arith.constant 0 : i32
    %c1_i32_11 = arith.constant 1 : i32
    %c0_i32_12 = arith.constant 0 : i32
    %12 = tpu.memref_slice %arg3[%10, %c0_i32_12] : memref<50x64xf32, #tpu.memory_space<any>> -> memref<1x64xf32, #tpu.memory_space<any>>
    %c1_i32_13 = arith.constant 1 : i32
    %c0_i32_14 = arith.constant 0 : i32
    %13 = tpu.memref_slice %arg17[%c1_i32_13, %c0_i32_14] : memref<8x64xf32, #tpu.memory_space<vmem>> -> memref<1x64xf32, #tpu.memory_space<vmem>>
    %14 = tpu.memref_slice %arg19[%c0_i32_10, %c1_i32_11] : memref<2x8x!tpu.dma_semaphore, #tpu.memory_space<semaphore_mem>> -> memref<1x1x!tpu.dma_semaphore, #tpu.memory_space<semaphore_mem>>
    %15 = tpu.memref_squeeze %14 : memref<1x1x!tpu.dma_semaphore, #tpu.memory_space<semaphore_mem>> -> memref<!tpu.dma_semaphore, #tpu.memory_space<semaphore_mem>>
    tpu.enqueue_dma source(%12 : memref<1x64xf32, #tpu.memory_space<any>>) target(%13 : memref<1x64xf32, #tpu.memory_space<vmem>>) target_semaphore(%15 : memref<!tpu.dma_semaphore, #tpu.memory_space<semaphore_mem>>)
    %c1_i32_15 = arith.constant 1 : i32
    %c1_i32_16 = arith.constant 1 : i32
    %c0_i32_17 = arith.constant 0 : i32
    %16 = tpu.memref_slice %arg4[%11, %c0_i32_17] : memref<60x64xf32, #tpu.memory_space<any>> -> memref<1x64xf32, #tpu.memory_space<any>>
    %c1_i32_18 = arith.constant 1 : i32
    %c0_i32_19 = arith.constant 0 : i32
    %17 = tpu.memref_slice %arg18[%c1_i32_18, %c0_i32_19] : memref<8x64xf32, #tpu.memory_space<vmem>> -> memref<1x64xf32, #tpu.memory_space<vmem>>
    %18 = tpu.memref_slice %arg19[%c1_i32_15, %c1_i32_16] : memref<2x8x!tpu.dma_semaphore, #tpu.memory_space<semaphore_mem>> -> memref<1x1x!tpu.dma_semaphore, #tpu.memory_space<semaphore_mem>>
    %19 = tpu.memref_squeeze %18 : memref<1x1x!tpu.dma_semaphore, #tpu.memory_space<semaphore_mem>> -> memref<!tpu.dma_semaphore, #tpu.memory_space<semaphore_mem>>
    tpu.enqueue_dma source(%16 : memref<1x64xf32, #tpu.memory_space<any>>) target(%17 : memref<1x64xf32, #tpu.memory_space<vmem>>) target_semaphore(%19 : memref<!tpu.dma_semaphore, #tpu.memory_space<semaphore_mem>>)
    %c2 = arith.constant 2 : index
    %20 = memref.load %arg1[%c2] : memref<8xi32, #tpu.memory_space<smem>>
    %c2_20 = arith.constant 2 : index
    %21 = memref.load %arg2[%c2_20] : memref<8xi32, #tpu.memory_space<smem>>
    %c0_i32_21 = arith.constant 0 : i32
    %c2_i32 = arith.constant 2 : i32
    %c0_i32_22 = arith.constant 0 : i32
    %22 = tpu.memref_slice %arg3[%20, %c0_i32_22] : memref<50x64xf32, #tpu.memory_space<any>> -> memref<1x64xf32, #tpu.memory_space<any>>
    %c2_i32_23 = arith.constant 2 : i32
    %c0_i32_24 = arith.constant 0 : i32
    %23 = tpu.memref_slice %arg17[%c2_i32_23, %c0_i32_24] : memref<8x64xf32, #tpu.memory_space<vmem>> -> memref<1x64xf32, #tpu.memory_space<vmem>>
    %24 = tpu.memref_slice %arg19[%c0_i32_21, %c2_i32] : memref<2x8x!tpu.dma_semaphore, #tpu.memory_space<semaphore_mem>> -> memref<1x1x!tpu.dma_semaphore, #tpu.memory_space<semaphore_mem>>
    %25 = tpu.memref_squeeze %24 : memref<1x1x!tpu.dma_semaphore, #tpu.memory_space<semaphore_mem>> -> memref<!tpu.dma_semaphore, #tpu.memory_space<semaphore_mem>>
    tpu.enqueue_dma source(%22 : memref<1x64xf32, #tpu.memory_space<any>>) target(%23 : memref<1x64xf32, #tpu.memory_space<vmem>>) target_semaphore(%25 : memref<!tpu.dma_semaphore, #tpu.memory_space<semaphore_mem>>)
    %c1_i32_25 = arith.constant 1 : i32
    %c2_i32_26 = arith.constant 2 : i32
    %c0_i32_27 = arith.constant 0 : i32
    %26 = tpu.memref_slice %arg4[%21, %c0_i32_27] : memref<60x64xf32, #tpu.memory_space<any>> -> memref<1x64xf32, #tpu.memory_space<any>>
    %c2_i32_28 = arith.constant 2 : i32
    %c0_i32_29 = arith.constant 0 : i32
    %27 = tpu.memref_slice %arg18[%c2_i32_28, %c0_i32_29] : memref<8x64xf32, #tpu.memory_space<vmem>> -> memref<1x64xf32, #tpu.memory_space<vmem>>
    %28 = tpu.memref_slice %arg19[%c1_i32_25, %c2_i32_26] : memref<2x8x!tpu.dma_semaphore, #tpu.memory_space<semaphore_mem>> -> memref<1x1x!tpu.dma_semaphore, #tpu.memory_space<semaphore_mem>>
    %29 = tpu.memref_squeeze %28 : memref<1x1x!tpu.dma_semaphore, #tpu.memory_space<semaphore_mem>> -> memref<!tpu.dma_semaphore, #tpu.memory_space<semaphore_mem>>
    tpu.enqueue_dma source(%26 : memref<1x64xf32, #tpu.memory_space<any>>) target(%27 : memref<1x64xf32, #tpu.memory_space<vmem>>) target_semaphore(%29 : memref<!tpu.dma_semaphore, #tpu.memory_space<semaphore_mem>>)
    %c3 = arith.constant 3 : index
    %30 = memref.load %arg1[%c3] : memref<8xi32, #tpu.memory_space<smem>>
    %c3_30 = arith.constant 3 : index
    %31 = memref.load %arg2[%c3_30] : memref<8xi32, #tpu.memory_space<smem>>
    %c0_i32_31 = arith.constant 0 : i32
    %c3_i32 = arith.constant 3 : i32
    %c0_i32_32 = arith.constant 0 : i32
    %32 = tpu.memref_slice %arg3[%30, %c0_i32_32] : memref<50x64xf32, #tpu.memory_space<any>> -> memref<1x64xf32, #tpu.memory_space<any>>
    %c3_i32_33 = arith.constant 3 : i32
    %c0_i32_34 = arith.constant 0 : i32
    %33 = tpu.memref_slice %arg17[%c3_i32_33, %c0_i32_34] : memref<8x64xf32, #tpu.memory_space<vmem>> -> memref<1x64xf32, #tpu.memory_space<vmem>>
    %34 = tpu.memref_slice %arg19[%c0_i32_31, %c3_i32] : memref<2x8x!tpu.dma_semaphore, #tpu.memory_space<semaphore_mem>> -> memref<1x1x!tpu.dma_semaphore, #tpu.memory_space<semaphore_mem>>
    %35 = tpu.memref_squeeze %34 : memref<1x1x!tpu.dma_semaphore, #tpu.memory_space<semaphore_mem>> -> memref<!tpu.dma_semaphore, #tpu.memory_space<semaphore_mem>>
    tpu.enqueue_dma source(%32 : memref<1x64xf32, #tpu.memory_space<any>>) target(%33 : memref<1x64xf32, #tpu.memory_space<vmem>>) target_semaphore(%35 : memref<!tpu.dma_semaphore, #tpu.memory_space<semaphore_mem>>)
    %c1_i32_35 = arith.constant 1 : i32
    %c3_i32_36 = arith.constant 3 : i32
    %c0_i32_37 = arith.constant 0 : i32
    %36 = tpu.memref_slice %arg4[%31, %c0_i32_37] : memref<60x64xf32, #tpu.memory_space<any>> -> memref<1x64xf32, #tpu.memory_space<any>>
    %c3_i32_38 = arith.constant 3 : i32
    %c0_i32_39 = arith.constant 0 : i32
    %37 = tpu.memref_slice %arg18[%c3_i32_38, %c0_i32_39] : memref<8x64xf32, #tpu.memory_space<vmem>> -> memref<1x64xf32, #tpu.memory_space<vmem>>
    %38 = tpu.memref_slice %arg19[%c1_i32_35, %c3_i32_36] : memref<2x8x!tpu.dma_semaphore, #tpu.memory_space<semaphore_mem>> -> memref<1x1x!tpu.dma_semaphore, #tpu.memory_space<semaphore_mem>>
    %39 = tpu.memref_squeeze %38 : memref<1x1x!tpu.dma_semaphore, #tpu.memory_space<semaphore_mem>> -> memref<!tpu.dma_semaphore, #tpu.memory_space<semaphore_mem>>
    tpu.enqueue_dma source(%36 : memref<1x64xf32, #tpu.memory_space<any>>) target(%37 : memref<1x64xf32, #tpu.memory_space<vmem>>) target_semaphore(%39 : memref<!tpu.dma_semaphore, #tpu.memory_space<semaphore_mem>>)
    %c4 = arith.constant 4 : index
    %40 = memref.load %arg1[%c4] : memref<8xi32, #tpu.memory_space<smem>>
    %c4_40 = arith.constant 4 : index
    %41 = memref.load %arg2[%c4_40] : memref<8xi32, #tpu.memory_space<smem>>
    %c0_i32_41 = arith.constant 0 : i32
    %c4_i32 = arith.constant 4 : i32
    %c0_i32_42 = arith.constant 0 : i32
    %42 = tpu.memref_slice %arg3[%40, %c0_i32_42] : memref<50x64xf32, #tpu.memory_space<any>> -> memref<1x64xf32, #tpu.memory_space<any>>
    %c4_i32_43 = arith.constant 4 : i32
    %c0_i32_44 = arith.constant 0 : i32
    %43 = tpu.memref_slice %arg17[%c4_i32_43, %c0_i32_44] : memref<8x64xf32, #tpu.memory_space<vmem>> -> memref<1x64xf32, #tpu.memory_space<vmem>>
    %44 = tpu.memref_slice %arg19[%c0_i32_41, %c4_i32] : memref<2x8x!tpu.dma_semaphore, #tpu.memory_space<semaphore_mem>> -> memref<1x1x!tpu.dma_semaphore, #tpu.memory_space<semaphore_mem>>
    %45 = tpu.memref_squeeze %44 : memref<1x1x!tpu.dma_semaphore, #tpu.memory_space<semaphore_mem>> -> memref<!tpu.dma_semaphore, #tpu.memory_space<semaphore_mem>>
    tpu.enqueue_dma source(%42 : memref<1x64xf32, #tpu.memory_space<any>>) target(%43 : memref<1x64xf32, #tpu.memory_space<vmem>>) target_semaphore(%45 : memref<!tpu.dma_semaphore, #tpu.memory_space<semaphore_mem>>)
    %c1_i32_45 = arith.constant 1 : i32
    %c4_i32_46 = arith.constant 4 : i32
    %c0_i32_47 = arith.constant 0 : i32
    %46 = tpu.memref_slice %arg4[%41, %c0_i32_47] : memref<60x64xf32, #tpu.memory_space<any>> -> memref<1x64xf32, #tpu.memory_space<any>>
    %c4_i32_48 = arith.constant 4 : i32
    %c0_i32_49 = arith.constant 0 : i32
    %47 = tpu.memref_slice %arg18[%c4_i32_48, %c0_i32_49] : memref<8x64xf32, #tpu.memory_space<vmem>> -> memref<1x64xf32, #tpu.memory_space<vmem>>
    %48 = tpu.memref_slice %arg19[%c1_i32_45, %c4_i32_46] : memref<2x8x!tpu.dma_semaphore, #tpu.memory_space<semaphore_mem>> -> memref<1x1x!tpu.dma_semaphore, #tpu.memory_space<semaphore_mem>>
    %49 = tpu.memref_squeeze %48 : memref<1x1x!tpu.dma_semaphore, #tpu.memory_space<semaphore_mem>> -> memref<!tpu.dma_semaphore, #tpu.memory_space<semaphore_mem>>
    tpu.enqueue_dma source(%46 : memref<1x64xf32, #tpu.memory_space<any>>) target(%47 : memref<1x64xf32, #tpu.memory_space<vmem>>) target_semaphore(%49 : memref<!tpu.dma_semaphore, #tpu.memory_space<semaphore_mem>>)
    %c5 = arith.constant 5 : index
    %50 = memref.load %arg1[%c5] : memref<8xi32, #tpu.memory_space<smem>>
    %c5_50 = arith.constant 5 : index
    %51 = memref.load %arg2[%c5_50] : memref<8xi32, #tpu.memory_space<smem>>
    %c0_i32_51 = arith.constant 0 : i32
    %c5_i32 = arith.constant 5 : i32
    %c0_i32_52 = arith.constant 0 : i32
    %52 = tpu.memref_slice %arg3[%50, %c0_i32_52] : memref<50x64xf32, #tpu.memory_space<any>> -> memref<1x64xf32, #tpu.memory_space<any>>
    %c5_i32_53 = arith.constant 5 : i32
    %c0_i32_54 = arith.constant 0 : i32
    %53 = tpu.memref_slice %arg17[%c5_i32_53, %c0_i32_54] : memref<8x64xf32, #tpu.memory_space<vmem>> -> memref<1x64xf32, #tpu.memory_space<vmem>>
    %54 = tpu.memref_slice %arg19[%c0_i32_51, %c5_i32] : memref<2x8x!tpu.dma_semaphore, #tpu.memory_space<semaphore_mem>> -> memref<1x1x!tpu.dma_semaphore, #tpu.memory_space<semaphore_mem>>
    %55 = tpu.memref_squeeze %54 : memref<1x1x!tpu.dma_semaphore, #tpu.memory_space<semaphore_mem>> -> memref<!tpu.dma_semaphore, #tpu.memory_space<semaphore_mem>>
    tpu.enqueue_dma source(%52 : memref<1x64xf32, #tpu.memory_space<any>>) target(%53 : memref<1x64xf32, #tpu.memory_space<vmem>>) target_semaphore(%55 : memref<!tpu.dma_semaphore, #tpu.memory_space<semaphore_mem>>)
    %c1_i32_55 = arith.constant 1 : i32
    %c5_i32_56 = arith.constant 5 : i32
    %c0_i32_57 = arith.constant 0 : i32
    %56 = tpu.memref_slice %arg4[%51, %c0_i32_57] : memref<60x64xf32, #tpu.memory_space<any>> -> memref<1x64xf32, #tpu.memory_space<any>>
    %c5_i32_58 = arith.constant 5 : i32
    %c0_i32_59 = arith.constant 0 : i32
    %57 = tpu.memref_slice %arg18[%c5_i32_58, %c0_i32_59] : memref<8x64xf32, #tpu.memory_space<vmem>> -> memref<1x64xf32, #tpu.memory_space<vmem>>
    %58 = tpu.memref_slice %arg19[%c1_i32_55, %c5_i32_56] : memref<2x8x!tpu.dma_semaphore, #tpu.memory_space<semaphore_mem>> -> memref<1x1x!tpu.dma_semaphore, #tpu.memory_space<semaphore_mem>>
    %59 = tpu.memref_squeeze %58 : memref<1x1x!tpu.dma_semaphore, #tpu.memory_space<semaphore_mem>> -> memref<!tpu.dma_semaphore, #tpu.memory_space<semaphore_mem>>
    tpu.enqueue_dma source(%56 : memref<1x64xf32, #tpu.memory_space<any>>) target(%57 : memref<1x64xf32, #tpu.memory_space<vmem>>) target_semaphore(%59 : memref<!tpu.dma_semaphore, #tpu.memory_space<semaphore_mem>>)
    %c6 = arith.constant 6 : index
    %60 = memref.load %arg1[%c6] : memref<8xi32, #tpu.memory_space<smem>>
    %c6_60 = arith.constant 6 : index
    %61 = memref.load %arg2[%c6_60] : memref<8xi32, #tpu.memory_space<smem>>
    %c0_i32_61 = arith.constant 0 : i32
    %c6_i32 = arith.constant 6 : i32
    %c0_i32_62 = arith.constant 0 : i32
    %62 = tpu.memref_slice %arg3[%60, %c0_i32_62] : memref<50x64xf32, #tpu.memory_space<any>> -> memref<1x64xf32, #tpu.memory_space<any>>
    %c6_i32_63 = arith.constant 6 : i32
    %c0_i32_64 = arith.constant 0 : i32
    %63 = tpu.memref_slice %arg17[%c6_i32_63, %c0_i32_64] : memref<8x64xf32, #tpu.memory_space<vmem>> -> memref<1x64xf32, #tpu.memory_space<vmem>>
    %64 = tpu.memref_slice %arg19[%c0_i32_61, %c6_i32] : memref<2x8x!tpu.dma_semaphore, #tpu.memory_space<semaphore_mem>> -> memref<1x1x!tpu.dma_semaphore, #tpu.memory_space<semaphore_mem>>
    %65 = tpu.memref_squeeze %64 : memref<1x1x!tpu.dma_semaphore, #tpu.memory_space<semaphore_mem>> -> memref<!tpu.dma_semaphore, #tpu.memory_space<semaphore_mem>>
    tpu.enqueue_dma source(%62 : memref<1x64xf32, #tpu.memory_space<any>>) target(%63 : memref<1x64xf32, #tpu.memory_space<vmem>>) target_semaphore(%65 : memref<!tpu.dma_semaphore, #tpu.memory_space<semaphore_mem>>)
    %c1_i32_65 = arith.constant 1 : i32
    %c6_i32_66 = arith.constant 6 : i32
    %c0_i32_67 = arith.constant 0 : i32
    %66 = tpu.memref_slice %arg4[%61, %c0_i32_67] : memref<60x64xf32, #tpu.memory_space<any>> -> memref<1x64xf32, #tpu.memory_space<any>>
    %c6_i32_68 = arith.constant 6 : i32
    %c0_i32_69 = arith.constant 0 : i32
    %67 = tpu.memref_slice %arg18[%c6_i32_68, %c0_i32_69] : memref<8x64xf32, #tpu.memory_space<vmem>> -> memref<1x64xf32, #tpu.memory_space<vmem>>
    %68 = tpu.memref_slice %arg19[%c1_i32_65, %c6_i32_66] : memref<2x8x!tpu.dma_semaphore, #tpu.memory_space<semaphore_mem>> -> memref<1x1x!tpu.dma_semaphore, #tpu.memory_space<semaphore_mem>>
    %69 = tpu.memref_squeeze %68 : memref<1x1x!tpu.dma_semaphore, #tpu.memory_space<semaphore_mem>> -> memref<!tpu.dma_semaphore, #tpu.memory_space<semaphore_mem>>
    tpu.enqueue_dma source(%66 : memref<1x64xf32, #tpu.memory_space<any>>) target(%67 : memref<1x64xf32, #tpu.memory_space<vmem>>) target_semaphore(%69 : memref<!tpu.dma_semaphore, #tpu.memory_space<semaphore_mem>>)
    %c7 = arith.constant 7 : index
    %70 = memref.load %arg1[%c7] : memref<8xi32, #tpu.memory_space<smem>>
    %c7_70 = arith.constant 7 : index
    %71 = memref.load %arg2[%c7_70] : memref<8xi32, #tpu.memory_space<smem>>
    %c0_i32_71 = arith.constant 0 : i32
    %c7_i32 = arith.constant 7 : i32
    %c0_i32_72 = arith.constant 0 : i32
    %72 = tpu.memref_slice %arg3[%70, %c0_i32_72] : memref<50x64xf32, #tpu.memory_space<any>> -> memref<1x64xf32, #tpu.memory_space<any>>
    %c7_i32_73 = arith.constant 7 : i32
    %c0_i32_74 = arith.constant 0 : i32
    %73 = tpu.memref_slice %arg17[%c7_i32_73, %c0_i32_74] : memref<8x64xf32, #tpu.memory_space<vmem>> -> memref<1x64xf32, #tpu.memory_space<vmem>>
    %74 = tpu.memref_slice %arg19[%c0_i32_71, %c7_i32] : memref<2x8x!tpu.dma_semaphore, #tpu.memory_space<semaphore_mem>> -> memref<1x1x!tpu.dma_semaphore, #tpu.memory_space<semaphore_mem>>
    %75 = tpu.memref_squeeze %74 : memref<1x1x!tpu.dma_semaphore, #tpu.memory_space<semaphore_mem>> -> memref<!tpu.dma_semaphore, #tpu.memory_space<semaphore_mem>>
    tpu.enqueue_dma source(%72 : memref<1x64xf32, #tpu.memory_space<any>>) target(%73 : memref<1x64xf32, #tpu.memory_space<vmem>>) target_semaphore(%75 : memref<!tpu.dma_semaphore, #tpu.memory_space<semaphore_mem>>)
    %c1_i32_75 = arith.constant 1 : i32
    %c7_i32_76 = arith.constant 7 : i32
    %c0_i32_77 = arith.constant 0 : i32
    %76 = tpu.memref_slice %arg4[%71, %c0_i32_77] : memref<60x64xf32, #tpu.memory_space<any>> -> memref<1x64xf32, #tpu.memory_space<any>>
    %c7_i32_78 = arith.constant 7 : i32
    %c0_i32_79 = arith.constant 0 : i32
    %77 = tpu.memref_slice %arg18[%c7_i32_78, %c0_i32_79] : memref<8x64xf32, #tpu.memory_space<vmem>> -> memref<1x64xf32, #tpu.memory_space<vmem>>
    %78 = tpu.memref_slice %arg19[%c1_i32_75, %c7_i32_76] : memref<2x8x!tpu.dma_semaphore, #tpu.memory_space<semaphore_mem>> -> memref<1x1x!tpu.dma_semaphore, #tpu.memory_space<semaphore_mem>>
    %79 = tpu.memref_squeeze %78 : memref<1x1x!tpu.dma_semaphore, #tpu.memory_space<semaphore_mem>> -> memref<!tpu.dma_semaphore, #tpu.memory_space<semaphore_mem>>
    tpu.enqueue_dma source(%76 : memref<1x64xf32, #tpu.memory_space<any>>) target(%77 : memref<1x64xf32, #tpu.memory_space<vmem>>) target_semaphore(%79 : memref<!tpu.dma_semaphore, #tpu.memory_space<semaphore_mem>>)
    %c0_i32_80 = arith.constant 0 : i32
    %c0_i32_81 = arith.constant 0 : i32
    %c0_i32_82 = arith.constant 0 : i32
    %80 = tpu.memref_slice %arg3[%0, %c0_i32_82] : memref<50x64xf32, #tpu.memory_space<any>> -> memref<1x64xf32, #tpu.memory_space<any>>
    %c0_i32_83 = arith.constant 0 : i32
    %c0_i32_84 = arith.constant 0 : i32
    %81 = tpu.memref_slice %arg17[%c0_i32_83, %c0_i32_84] : memref<8x64xf32, #tpu.memory_space<vmem>> -> memref<1x64xf32, #tpu.memory_space<vmem>>
    %82 = tpu.memref_slice %arg19[%c0_i32_80, %c0_i32_81] : memref<2x8x!tpu.dma_semaphore, #tpu.memory_space<semaphore_mem>> -> memref<1x1x!tpu.dma_semaphore, #tpu.memory_space<semaphore_mem>>
    %83 = tpu.memref_squeeze %82 : memref<1x1x!tpu.dma_semaphore, #tpu.memory_space<semaphore_mem>> -> memref<!tpu.dma_semaphore, #tpu.memory_space<semaphore_mem>>
    tpu.wait_dma2 semaphore(%83 : memref<!tpu.dma_semaphore, #tpu.memory_space<semaphore_mem>>) src(%80 : memref<1x64xf32, #tpu.memory_space<any>>) dst(%81 : memref<1x64xf32, #tpu.memory_space<vmem>>)
    %c1_i32_85 = arith.constant 1 : i32
    %c0_i32_86 = arith.constant 0 : i32
    %c0_i32_87 = arith.constant 0 : i32
    %84 = tpu.memref_slice %arg4[%1, %c0_i32_87] : memref<60x64xf32, #tpu.memory_space<any>> -> memref<1x64xf32, #tpu.memory_space<any>>
    %c0_i32_88 = arith.constant 0 : i32
    %c0_i32_89 = arith.constant 0 : i32
    %85 = tpu.memref_slice %arg18[%c0_i32_88, %c0_i32_89] : memref<8x64xf32, #tpu.memory_space<vmem>> -> memref<1x64xf32, #tpu.memory_space<vmem>>
    %86 = tpu.memref_slice %arg19[%c1_i32_85, %c0_i32_86] : memref<2x8x!tpu.dma_semaphore, #tpu.memory_space<semaphore_mem>> -> memref<1x1x!tpu.dma_semaphore, #tpu.memory_space<semaphore_mem>>
    %87 = tpu.memref_squeeze %86 : memref<1x1x!tpu.dma_semaphore, #tpu.memory_space<semaphore_mem>> -> memref<!tpu.dma_semaphore, #tpu.memory_space<semaphore_mem>>
    tpu.wait_dma2 semaphore(%87 : memref<!tpu.dma_semaphore, #tpu.memory_space<semaphore_mem>>) src(%84 : memref<1x64xf32, #tpu.memory_space<any>>) dst(%85 : memref<1x64xf32, #tpu.memory_space<vmem>>)
    %c0_i32_90 = arith.constant 0 : i32
    %c1_i32_91 = arith.constant 1 : i32
    %c0_i32_92 = arith.constant 0 : i32
    %88 = tpu.memref_slice %arg3[%10, %c0_i32_92] : memref<50x64xf32, #tpu.memory_space<any>> -> memref<1x64xf32, #tpu.memory_space<any>>
    %c1_i32_93 = arith.constant 1 : i32
    %c0_i32_94 = arith.constant 0 : i32
    %89 = tpu.memref_slice %arg17[%c1_i32_93, %c0_i32_94] : memref<8x64xf32, #tpu.memory_space<vmem>> -> memref<1x64xf32, #tpu.memory_space<vmem>>
    %90 = tpu.memref_slice %arg19[%c0_i32_90, %c1_i32_91] : memref<2x8x!tpu.dma_semaphore, #tpu.memory_space<semaphore_mem>> -> memref<1x1x!tpu.dma_semaphore, #tpu.memory_space<semaphore_mem>>
    %91 = tpu.memref_squeeze %90 : memref<1x1x!tpu.dma_semaphore, #tpu.memory_space<semaphore_mem>> -> memref<!tpu.dma_semaphore, #tpu.memory_space<semaphore_mem>>
    tpu.wait_dma2 semaphore(%91 : memref<!tpu.dma_semaphore, #tpu.memory_space<semaphore_mem>>) src(%88 : memref<1x64xf32, #tpu.memory_space<any>>) dst(%89 : memref<1x64xf32, #tpu.memory_space<vmem>>)
    %c1_i32_95 = arith.constant 1 : i32
    %c1_i32_96 = arith.constant 1 : i32
    %c0_i32_97 = arith.constant 0 : i32
    %92 = tpu.memref_slice %arg4[%11, %c0_i32_97] : memref<60x64xf32, #tpu.memory_space<any>> -> memref<1x64xf32, #tpu.memory_space<any>>
    %c1_i32_98 = arith.constant 1 : i32
    %c0_i32_99 = arith.constant 0 : i32
    %93 = tpu.memref_slice %arg18[%c1_i32_98, %c0_i32_99] : memref<8x64xf32, #tpu.memory_space<vmem>> -> memref<1x64xf32, #tpu.memory_space<vmem>>
    %94 = tpu.memref_slice %arg19[%c1_i32_95, %c1_i32_96] : memref<2x8x!tpu.dma_semaphore, #tpu.memory_space<semaphore_mem>> -> memref<1x1x!tpu.dma_semaphore, #tpu.memory_space<semaphore_mem>>
    %95 = tpu.memref_squeeze %94 : memref<1x1x!tpu.dma_semaphore, #tpu.memory_space<semaphore_mem>> -> memref<!tpu.dma_semaphore, #tpu.memory_space<semaphore_mem>>
    tpu.wait_dma2 semaphore(%95 : memref<!tpu.dma_semaphore, #tpu.memory_space<semaphore_mem>>) src(%92 : memref<1x64xf32, #tpu.memory_space<any>>) dst(%93 : memref<1x64xf32, #tpu.memory_space<vmem>>)
    %c0_i32_100 = arith.constant 0 : i32
    %c2_i32_101 = arith.constant 2 : i32
    %c0_i32_102 = arith.constant 0 : i32
    %96 = tpu.memref_slice %arg3[%20, %c0_i32_102] : memref<50x64xf32, #tpu.memory_space<any>> -> memref<1x64xf32, #tpu.memory_space<any>>
    %c2_i32_103 = arith.constant 2 : i32
    %c0_i32_104 = arith.constant 0 : i32
    %97 = tpu.memref_slice %arg17[%c2_i32_103, %c0_i32_104] : memref<8x64xf32, #tpu.memory_space<vmem>> -> memref<1x64xf32, #tpu.memory_space<vmem>>
    %98 = tpu.memref_slice %arg19[%c0_i32_100, %c2_i32_101] : memref<2x8x!tpu.dma_semaphore, #tpu.memory_space<semaphore_mem>> -> memref<1x1x!tpu.dma_semaphore, #tpu.memory_space<semaphore_mem>>
    %99 = tpu.memref_squeeze %98 : memref<1x1x!tpu.dma_semaphore, #tpu.memory_space<semaphore_mem>> -> memref<!tpu.dma_semaphore, #tpu.memory_space<semaphore_mem>>
    tpu.wait_dma2 semaphore(%99 : memref<!tpu.dma_semaphore, #tpu.memory_space<semaphore_mem>>) src(%96 : memref<1x64xf32, #tpu.memory_space<any>>) dst(%97 : memref<1x64xf32, #tpu.memory_space<vmem>>)
    %c1_i32_105 = arith.constant 1 : i32
    %c2_i32_106 = arith.constant 2 : i32
    %c0_i32_107 = arith.constant 0 : i32
    %100 = tpu.memref_slice %arg4[%21, %c0_i32_107] : memref<60x64xf32, #tpu.memory_space<any>> -> memref<1x64xf32, #tpu.memory_space<any>>
    %c2_i32_108 = arith.constant 2 : i32
    %c0_i32_109 = arith.constant 0 : i32
    %101 = tpu.memref_slice %arg18[%c2_i32_108, %c0_i32_109] : memref<8x64xf32, #tpu.memory_space<vmem>> -> memref<1x64xf32, #tpu.memory_space<vmem>>
    %102 = tpu.memref_slice %arg19[%c1_i32_105, %c2_i32_106] : memref<2x8x!tpu.dma_semaphore, #tpu.memory_space<semaphore_mem>> -> memref<1x1x!tpu.dma_semaphore, #tpu.memory_space<semaphore_mem>>
    %103 = tpu.memref_squeeze %102 : memref<1x1x!tpu.dma_semaphore, #tpu.memory_space<semaphore_mem>> -> memref<!tpu.dma_semaphore, #tpu.memory_space<semaphore_mem>>
    tpu.wait_dma2 semaphore(%103 : memref<!tpu.dma_semaphore, #tpu.memory_space<semaphore_mem>>) src(%100 : memref<1x64xf32, #tpu.memory_space<any>>) dst(%101 : memref<1x64xf32, #tpu.memory_space<vmem>>)
    %c0_i32_110 = arith.constant 0 : i32
    %c3_i32_111 = arith.constant 3 : i32
    %c0_i32_112 = arith.constant 0 : i32
    %104 = tpu.memref_slice %arg3[%30, %c0_i32_112] : memref<50x64xf32, #tpu.memory_space<any>> -> memref<1x64xf32, #tpu.memory_space<any>>
    %c3_i32_113 = arith.constant 3 : i32
    %c0_i32_114 = arith.constant 0 : i32
    %105 = tpu.memref_slice %arg17[%c3_i32_113, %c0_i32_114] : memref<8x64xf32, #tpu.memory_space<vmem>> -> memref<1x64xf32, #tpu.memory_space<vmem>>
    %106 = tpu.memref_slice %arg19[%c0_i32_110, %c3_i32_111] : memref<2x8x!tpu.dma_semaphore, #tpu.memory_space<semaphore_mem>> -> memref<1x1x!tpu.dma_semaphore, #tpu.memory_space<semaphore_mem>>
    %107 = tpu.memref_squeeze %106 : memref<1x1x!tpu.dma_semaphore, #tpu.memory_space<semaphore_mem>> -> memref<!tpu.dma_semaphore, #tpu.memory_space<semaphore_mem>>
    tpu.wait_dma2 semaphore(%107 : memref<!tpu.dma_semaphore, #tpu.memory_space<semaphore_mem>>) src(%104 : memref<1x64xf32, #tpu.memory_space<any>>) dst(%105 : memref<1x64xf32, #tpu.memory_space<vmem>>)
    %c1_i32_115 = arith.constant 1 : i32
    %c3_i32_116 = arith.constant 3 : i32
    %c0_i32_117 = arith.constant 0 : i32
    %108 = tpu.memref_slice %arg4[%31, %c0_i32_117] : memref<60x64xf32, #tpu.memory_space<any>> -> memref<1x64xf32, #tpu.memory_space<any>>
    %c3_i32_118 = arith.constant 3 : i32
    %c0_i32_119 = arith.constant 0 : i32
    %109 = tpu.memref_slice %arg18[%c3_i32_118, %c0_i32_119] : memref<8x64xf32, #tpu.memory_space<vmem>> -> memref<1x64xf32, #tpu.memory_space<vmem>>
    %110 = tpu.memref_slice %arg19[%c1_i32_115, %c3_i32_116] : memref<2x8x!tpu.dma_semaphore, #tpu.memory_space<semaphore_mem>> -> memref<1x1x!tpu.dma_semaphore, #tpu.memory_space<semaphore_mem>>
    %111 = tpu.memref_squeeze %110 : memref<1x1x!tpu.dma_semaphore, #tpu.memory_space<semaphore_mem>> -> memref<!tpu.dma_semaphore, #tpu.memory_space<semaphore_mem>>
    tpu.wait_dma2 semaphore(%111 : memref<!tpu.dma_semaphore, #tpu.memory_space<semaphore_mem>>) src(%108 : memref<1x64xf32, #tpu.memory_space<any>>) dst(%109 : memref<1x64xf32, #tpu.memory_space<vmem>>)
    %c0_i32_120 = arith.constant 0 : i32
    %c4_i32_121 = arith.constant 4 : i32
    %c0_i32_122 = arith.constant 0 : i32
    %112 = tpu.memref_slice %arg3[%40, %c0_i32_122] : memref<50x64xf32, #tpu.memory_space<any>> -> memref<1x64xf32, #tpu.memory_space<any>>
    %c4_i32_123 = arith.constant 4 : i32
    %c0_i32_124 = arith.constant 0 : i32
    %113 = tpu.memref_slice %arg17[%c4_i32_123, %c0_i32_124] : memref<8x64xf32, #tpu.memory_space<vmem>> -> memref<1x64xf32, #tpu.memory_space<vmem>>
    %114 = tpu.memref_slice %arg19[%c0_i32_120, %c4_i32_121] : memref<2x8x!tpu.dma_semaphore, #tpu.memory_space<semaphore_mem>> -> memref<1x1x!tpu.dma_semaphore, #tpu.memory_space<semaphore_mem>>
    %115 = tpu.memref_squeeze %114 : memref<1x1x!tpu.dma_semaphore, #tpu.memory_space<semaphore_mem>> -> memref<!tpu.dma_semaphore, #tpu.memory_space<semaphore_mem>>
    tpu.wait_dma2 semaphore(%115 : memref<!tpu.dma_semaphore, #tpu.memory_space<semaphore_mem>>) src(%112 : memref<1x64xf32, #tpu.memory_space<any>>) dst(%113 : memref<1x64xf32, #tpu.memory_space<vmem>>)
    %c1_i32_125 = arith.constant 1 : i32
    %c4_i32_126 = arith.constant 4 : i32
    %c0_i32_127 = arith.constant 0 : i32
    %116 = tpu.memref_slice %arg4[%41, %c0_i32_127] : memref<60x64xf32, #tpu.memory_space<any>> -> memref<1x64xf32, #tpu.memory_space<any>>
    %c4_i32_128 = arith.constant 4 : i32
    %c0_i32_129 = arith.constant 0 : i32
    %117 = tpu.memref_slice %arg18[%c4_i32_128, %c0_i32_129] : memref<8x64xf32, #tpu.memory_space<vmem>> -> memref<1x64xf32, #tpu.memory_space<vmem>>
    %118 = tpu.memref_slice %arg19[%c1_i32_125, %c4_i32_126] : memref<2x8x!tpu.dma_semaphore, #tpu.memory_space<semaphore_mem>> -> memref<1x1x!tpu.dma_semaphore, #tpu.memory_space<semaphore_mem>>
    %119 = tpu.memref_squeeze %118 : memref<1x1x!tpu.dma_semaphore, #tpu.memory_space<semaphore_mem>> -> memref<!tpu.dma_semaphore, #tpu.memory_space<semaphore_mem>>
    tpu.wait_dma2 semaphore(%119 : memref<!tpu.dma_semaphore, #tpu.memory_space<semaphore_mem>>) src(%116 : memref<1x64xf32, #tpu.memory_space<any>>) dst(%117 : memref<1x64xf32, #tpu.memory_space<vmem>>)
    %c0_i32_130 = arith.constant 0 : i32
    %c5_i32_131 = arith.constant 5 : i32
    %c0_i32_132 = arith.constant 0 : i32
    %120 = tpu.memref_slice %arg3[%50, %c0_i32_132] : memref<50x64xf32, #tpu.memory_space<any>> -> memref<1x64xf32, #tpu.memory_space<any>>
    %c5_i32_133 = arith.constant 5 : i32
    %c0_i32_134 = arith.constant 0 : i32
    %121 = tpu.memref_slice %arg17[%c5_i32_133, %c0_i32_134] : memref<8x64xf32, #tpu.memory_space<vmem>> -> memref<1x64xf32, #tpu.memory_space<vmem>>
    %122 = tpu.memref_slice %arg19[%c0_i32_130, %c5_i32_131] : memref<2x8x!tpu.dma_semaphore, #tpu.memory_space<semaphore_mem>> -> memref<1x1x!tpu.dma_semaphore, #tpu.memory_space<semaphore_mem>>
    %123 = tpu.memref_squeeze %122 : memref<1x1x!tpu.dma_semaphore, #tpu.memory_space<semaphore_mem>> -> memref<!tpu.dma_semaphore, #tpu.memory_space<semaphore_mem>>
    tpu.wait_dma2 semaphore(%123 : memref<!tpu.dma_semaphore, #tpu.memory_space<semaphore_mem>>) src(%120 : memref<1x64xf32, #tpu.memory_space<any>>) dst(%121 : memref<1x64xf32, #tpu.memory_space<vmem>>)
    %c1_i32_135 = arith.constant 1 : i32
    %c5_i32_136 = arith.constant 5 : i32
    %c0_i32_137 = arith.constant 0 : i32
    %124 = tpu.memref_slice %arg4[%51, %c0_i32_137] : memref<60x64xf32, #tpu.memory_space<any>> -> memref<1x64xf32, #tpu.memory_space<any>>
    %c5_i32_138 = arith.constant 5 : i32
    %c0_i32_139 = arith.constant 0 : i32
    %125 = tpu.memref_slice %arg18[%c5_i32_138, %c0_i32_139] : memref<8x64xf32, #tpu.memory_space<vmem>> -> memref<1x64xf32, #tpu.memory_space<vmem>>
    %126 = tpu.memref_slice %arg19[%c1_i32_135, %c5_i32_136] : memref<2x8x!tpu.dma_semaphore, #tpu.memory_space<semaphore_mem>> -> memref<1x1x!tpu.dma_semaphore, #tpu.memory_space<semaphore_mem>>
    %127 = tpu.memref_squeeze %126 : memref<1x1x!tpu.dma_semaphore, #tpu.memory_space<semaphore_mem>> -> memref<!tpu.dma_semaphore, #tpu.memory_space<semaphore_mem>>
    tpu.wait_dma2 semaphore(%127 : memref<!tpu.dma_semaphore, #tpu.memory_space<semaphore_mem>>) src(%124 : memref<1x64xf32, #tpu.memory_space<any>>) dst(%125 : memref<1x64xf32, #tpu.memory_space<vmem>>)
    %c0_i32_140 = arith.constant 0 : i32
    %c6_i32_141 = arith.constant 6 : i32
    %c0_i32_142 = arith.constant 0 : i32
    %128 = tpu.memref_slice %arg3[%60, %c0_i32_142] : memref<50x64xf32, #tpu.memory_space<any>> -> memref<1x64xf32, #tpu.memory_space<any>>
    %c6_i32_143 = arith.constant 6 : i32
    %c0_i32_144 = arith.constant 0 : i32
    %129 = tpu.memref_slice %arg17[%c6_i32_143, %c0_i32_144] : memref<8x64xf32, #tpu.memory_space<vmem>> -> memref<1x64xf32, #tpu.memory_space<vmem>>
    %130 = tpu.memref_slice %arg19[%c0_i32_140, %c6_i32_141] : memref<2x8x!tpu.dma_semaphore, #tpu.memory_space<semaphore_mem>> -> memref<1x1x!tpu.dma_semaphore, #tpu.memory_space<semaphore_mem>>
    %131 = tpu.memref_squeeze %130 : memref<1x1x!tpu.dma_semaphore, #tpu.memory_space<semaphore_mem>> -> memref<!tpu.dma_semaphore, #tpu.memory_space<semaphore_mem>>
    tpu.wait_dma2 semaphore(%131 : memref<!tpu.dma_semaphore, #tpu.memory_space<semaphore_mem>>) src(%128 : memref<1x64xf32, #tpu.memory_space<any>>) dst(%129 : memref<1x64xf32, #tpu.memory_space<vmem>>)
    %c1_i32_145 = arith.constant 1 : i32
    %c6_i32_146 = arith.constant 6 : i32
    %c0_i32_147 = arith.constant 0 : i32
    %132 = tpu.memref_slice %arg4[%61, %c0_i32_147] : memref<60x64xf32, #tpu.memory_space<any>> -> memref<1x64xf32, #tpu.memory_space<any>>
    %c6_i32_148 = arith.constant 6 : i32
    %c0_i32_149 = arith.constant 0 : i32
    %133 = tpu.memref_slice %arg18[%c6_i32_148, %c0_i32_149] : memref<8x64xf32, #tpu.memory_space<vmem>> -> memref<1x64xf32, #tpu.memory_space<vmem>>
    %134 = tpu.memref_slice %arg19[%c1_i32_145, %c6_i32_146] : memref<2x8x!tpu.dma_semaphore, #tpu.memory_space<semaphore_mem>> -> memref<1x1x!tpu.dma_semaphore, #tpu.memory_space<semaphore_mem>>
    %135 = tpu.memref_squeeze %134 : memref<1x1x!tpu.dma_semaphore, #tpu.memory_space<semaphore_mem>> -> memref<!tpu.dma_semaphore, #tpu.memory_space<semaphore_mem>>
    tpu.wait_dma2 semaphore(%135 : memref<!tpu.dma_semaphore, #tpu.memory_space<semaphore_mem>>) src(%132 : memref<1x64xf32, #tpu.memory_space<any>>) dst(%133 : memref<1x64xf32, #tpu.memory_space<vmem>>)
    %c0_i32_150 = arith.constant 0 : i32
    %c7_i32_151 = arith.constant 7 : i32
    %c0_i32_152 = arith.constant 0 : i32
    %136 = tpu.memref_slice %arg3[%70, %c0_i32_152] : memref<50x64xf32, #tpu.memory_space<any>> -> memref<1x64xf32, #tpu.memory_space<any>>
    %c7_i32_153 = arith.constant 7 : i32
    %c0_i32_154 = arith.constant 0 : i32
    %137 = tpu.memref_slice %arg17[%c7_i32_153, %c0_i32_154] : memref<8x64xf32, #tpu.memory_space<vmem>> -> memref<1x64xf32, #tpu.memory_space<vmem>>
    %138 = tpu.memref_slice %arg19[%c0_i32_150, %c7_i32_151] : memref<2x8x!tpu.dma_semaphore, #tpu.memory_space<semaphore_mem>> -> memref<1x1x!tpu.dma_semaphore, #tpu.memory_space<semaphore_mem>>
    %139 = tpu.memref_squeeze %138 : memref<1x1x!tpu.dma_semaphore, #tpu.memory_space<semaphore_mem>> -> memref<!tpu.dma_semaphore, #tpu.memory_space<semaphore_mem>>
    tpu.wait_dma2 semaphore(%139 : memref<!tpu.dma_semaphore, #tpu.memory_space<semaphore_mem>>) src(%136 : memref<1x64xf32, #tpu.memory_space<any>>) dst(%137 : memref<1x64xf32, #tpu.memory_space<vmem>>)
    %c1_i32_155 = arith.constant 1 : i32
    %c7_i32_156 = arith.constant 7 : i32
    %c0_i32_157 = arith.constant 0 : i32
    %140 = tpu.memref_slice %arg4[%71, %c0_i32_157] : memref<60x64xf32, #tpu.memory_space<any>> -> memref<1x64xf32, #tpu.memory_space<any>>
    %c7_i32_158 = arith.constant 7 : i32
    %c0_i32_159 = arith.constant 0 : i32
    %141 = tpu.memref_slice %arg18[%c7_i32_158, %c0_i32_159] : memref<8x64xf32, #tpu.memory_space<vmem>> -> memref<1x64xf32, #tpu.memory_space<vmem>>
    %142 = tpu.memref_slice %arg19[%c1_i32_155, %c7_i32_156] : memref<2x8x!tpu.dma_semaphore, #tpu.memory_space<semaphore_mem>> -> memref<1x1x!tpu.dma_semaphore, #tpu.memory_space<semaphore_mem>>
    %143 = tpu.memref_squeeze %142 : memref<1x1x!tpu.dma_semaphore, #tpu.memory_space<semaphore_mem>> -> memref<!tpu.dma_semaphore, #tpu.memory_space<semaphore_mem>>
    tpu.wait_dma2 semaphore(%143 : memref<!tpu.dma_semaphore, #tpu.memory_space<semaphore_mem>>) src(%140 : memref<1x64xf32, #tpu.memory_space<any>>) dst(%141 : memref<1x64xf32, #tpu.memory_space<vmem>>)
    %c0_160 = arith.constant 0 : index
    %c0_161 = arith.constant 0 : index
    %144 = vector.load %arg17[%c0_160, %c0_161] : memref<8x64xf32, #tpu.memory_space<vmem>>, vector<8x64xf32>
    %c0_162 = arith.constant 0 : index
    %c0_163 = arith.constant 0 : index
    %145 = vector.load %arg18[%c0_162, %c0_163] : memref<8x64xf32, #tpu.memory_space<vmem>>, vector<8x64xf32>
    %146 = tpu.concatenate %144, %145 in 1 : vector<8x64xf32>, vector<8x64xf32> -> vector<8x128xf32>
    %c0_164 = arith.constant 0 : index
    %c0_165 = arith.constant 0 : index
    %147 = vector.load %arg6[%c0_164, %c0_165] : memref<128x256xf32, #tpu.memory_space<vmem>>, vector<128x256xf32>
    %cst = arith.constant dense<0.000000e+00> : vector<8x256xf32>
    %148 = tpu.matmul %146, %147, %cst {dimension_numbers = #tpu.dot_dimension_numbers<[1], [0], [0], [1], [0, 0, 1, 1], [], []>} : vector<8x128xf32>, vector<128x256xf32>, vector<8x256xf32> -> vector<8x256xf32>
    %c0_166 = arith.constant 0 : index
    %c0_167 = arith.constant 0 : index
    %149 = vector.load %arg7[%c0_166, %c0_167] : memref<1x256xf32, #tpu.memory_space<vmem>>, vector<1x256xf32>
    %150 = vector.broadcast %149 : vector<1x256xf32> to vector<8x256xf32>
    %151 = arith.addf %148, %150 : vector<8x256xf32>
    %152 = vector.extract_strided_slice %151 {offsets = [0, 0], sizes = [8, 128], strides = [1, 1]} : vector<8x256xf32> to vector<8x128xf32>
    %cst_168 = arith.constant 0.000000e+00 : f32
    %153 = vector.broadcast %cst_168 : f32 to vector<8x128xf32>
    %154 = arith.maximumf %152, %153 : vector<8x128xf32>
    %155 = vector.extract_strided_slice %151 {offsets = [0, 128], sizes = [8, 128], strides = [1, 1]} : vector<8x256xf32> to vector<8x128xf32>
    %156 = math.tanh %155 : vector<8x128xf32>
    %cst_169 = arith.constant 3.000000e+00 : f32
    %157 = vector.broadcast %cst_169 : f32 to vector<8x128xf32>
    %158 = arith.mulf %156, %157 : vector<8x128xf32>
    %c0_170 = arith.constant 0 : index
    %c0_171 = arith.constant 0 : index
    %159 = vector.load %arg5[%c0_170, %c0_171] : memref<8x128xf32, #tpu.memory_space<vmem>>, vector<8x128xf32>
    %cst_172 = arith.constant 5.000000e-01 : f32
    %160 = vector.broadcast %cst_172 : f32 to vector<8x128xf32>
    %161 = arith.mulf %160, %158 : vector<8x128xf32>
    %162 = math.exp %161 : vector<8x128xf32>
    %163 = arith.mulf %159, %162 : vector<8x128xf32>
    %164 = arith.addf %154, %163 : vector<8x128xf32>
    %c0_173 = arith.constant 0 : index
    %c0_174 = arith.constant 0 : index
    %165 = vector.load %arg10[%c0_173, %c0_174] : memref<128x256xf32, #tpu.memory_space<vmem>>, vector<128x256xf32>
    %cst_175 = arith.constant dense<0.000000e+00> : vector<8x256xf32>
    %166 = tpu.matmul %164, %165, %cst_175 {dimension_numbers = #tpu.dot_dimension_numbers<[1], [0], [0], [1], [0, 0, 1, 1], [], []>} : vector<8x128xf32>, vector<128x256xf32>, vector<8x256xf32> -> vector<8x256xf32>
    %c0_176 = arith.constant 0 : index
    %c0_177 = arith.constant 0 : index
    %167 = vector.load %arg11[%c0_176, %c0_177] : memref<1x256xf32, #tpu.memory_space<vmem>>, vector<1x256xf32>
    %168 = vector.broadcast %167 : vector<1x256xf32> to vector<8x256xf32>
    %169 = arith.addf %166, %168 : vector<8x256xf32>
    %170 = vector.extract_strided_slice %169 {offsets = [0, 0], sizes = [8, 128], strides = [1, 1]} : vector<8x256xf32> to vector<8x128xf32>
    %c0_178 = arith.constant 0 : index
    %c0_179 = arith.constant 0 : index
    %171 = vector.load %arg13[%c0_178, %c0_179] : memref<8x128xf32, #tpu.memory_space<vmem>>, vector<8x128xf32>
    tpu.vector_store %arg13[%c0_178, %c0_179], %170 {strides = array<i32>} : memref<8x128xf32, #tpu.memory_space<vmem>>, vector<8x128xf32>,
    %172 = vector.extract_strided_slice %169 {offsets = [0, 128], sizes = [8, 128], strides = [1, 1]} : vector<8x256xf32> to vector<8x128xf32>
    %cst_180 = arith.constant 0.000000e+00 : f32
    %173 = vector.broadcast %cst_180 : f32 to vector<8x128xf32>
    %174 = arith.maximumf %172, %173 : vector<8x128xf32>
    %c0_181 = arith.constant 0 : index
    %c0_182 = arith.constant 0 : index
    %175 = vector.load %arg14[%c0_181, %c0_182] : memref<8x128xf32, #tpu.memory_space<vmem>>, vector<8x128xf32>
    tpu.vector_store %arg14[%c0_181, %c0_182], %174 {strides = array<i32>} : memref<8x128xf32, #tpu.memory_space<vmem>>, vector<8x128xf32>,
    %c0_183 = arith.constant 0 : index
    %c0_184 = arith.constant 0 : index
    %176 = vector.load %arg8[%c0_183, %c0_184] : memref<1x128xf32, #tpu.memory_space<vmem>>, vector<1x128xf32>
    %177 = vector.broadcast %176 : vector<1x128xf32> to vector<8x128xf32>
    %178 = arith.mulf %164, %177 : vector<8x128xf32>
    %cst_185 = arith.constant dense<0.000000e+00> : vector<8xf32>
    %179 = vector.multi_reduction <add>, %178, %cst_185 [1] : vector<8x128xf32> to vector<8xf32>
    %180 = vector.shape_cast %179 : vector<8xf32> to vector<8x1xf32>
    %c0_186 = arith.constant 0 : index
    %c0_187 = arith.constant 0 : index
    %181 = memref.load %arg9[%c0_186, %c0_187] : memref<1x1xf32, #tpu.memory_space<smem>>
    %182 = vector.broadcast %181 : f32 to vector<8x1xf32>
    %183 = arith.addf %180, %182 : vector<8x1xf32>
    %c0_188 = arith.constant 0 : index
    %c0_189 = arith.constant 0 : index
    %184 = vector.load %arg12[%c0_188, %c0_189] : memref<8x1xf32, #tpu.memory_space<vmem>>, vector<8x1xf32>
    tpu.vector_store %arg12[%c0_188, %c0_189], %183 {strides = array<i32>} : memref<8x1xf32, #tpu.memory_space<vmem>>, vector<8x1xf32>,
    %c0_190 = arith.constant 0 : index
    %c0_191 = arith.constant 0 : index
    %185 = vector.load %arg15[%c0_190, %c0_191] : memref<8x128xf32, #tpu.memory_space<vmem>>, vector<8x128xf32>
    tpu.vector_store %arg15[%c0_190, %c0_191], %154 {strides = array<i32>} : memref<8x128xf32, #tpu.memory_space<vmem>>, vector<8x128xf32>,
    %c0_192 = arith.constant 0 : index
    %c0_193 = arith.constant 0 : index
    %186 = vector.load %arg16[%c0_192, %c0_193] : memref<8x128xf32, #tpu.memory_space<vmem>>, vector<8x128xf32>
    tpu.vector_store %arg16[%c0_192, %c0_193], %158 {strides = array<i32>} : memref<8x128xf32, #tpu.memory_space<vmem>>, vector<8x128xf32>,
    return
  }
  func.func @transform_2(%arg0: i32, %arg1: memref<8xi32, #tpu.memory_space<smem>>, %arg2: memref<8xi32, #tpu.memory_space<smem>>) -> (i32, i32) {
    %c0_i32 = arith.constant 0 : i32
    %c0_i32_0 = arith.constant 0 : i32
    %c0_i32_1 = arith.constant 0 : i32
    return %c0_i32, %c0_i32_0 : i32, i32
  }
  func.func @transform_3(%arg0: i32, %arg1: memref<8xi32, #tpu.memory_space<smem>>, %arg2: memref<8xi32, #tpu.memory_space<smem>>) -> (i32, i32) {
    %c0_i32 = arith.constant 0 : i32
    %c0_i32_0 = arith.constant 0 : i32
    %c0_i32_1 = arith.constant 0 : i32
    return %c0_i32, %c0_i32_0 : i32, i32
  }
  func.func @transform_4(%arg0: i32, %arg1: memref<8xi32, #tpu.memory_space<smem>>, %arg2: memref<8xi32, #tpu.memory_space<smem>>) -> (i32, i32) {
    %c0_i32 = arith.constant 0 : i32
    %c0_i32_0 = arith.constant 0 : i32
    %c0_i32_1 = arith.constant 0 : i32
    return %c0_i32, %c0_i32_0 : i32, i32
  }
  func.func @transform_5(%arg0: i32, %arg1: memref<8xi32, #tpu.memory_space<smem>>, %arg2: memref<8xi32, #tpu.memory_space<smem>>) -> (i32, i32) {
    %c0_i32 = arith.constant 0 : i32
    %c0_i32_0 = arith.constant 0 : i32
    %c0_i32_1 = arith.constant 0 : i32
    return %c0_i32, %c0_i32_0 : i32, i32
  }
  func.func @transform_6(%arg0: i32, %arg1: memref<8xi32, #tpu.memory_space<smem>>, %arg2: memref<8xi32, #tpu.memory_space<smem>>) -> (i32, i32) {
    %c0_i32 = arith.constant 0 : i32
    %c0_i32_0 = arith.constant 0 : i32
    %c0_i32_1 = arith.constant 0 : i32
    return %c0_i32, %c0_i32_0 : i32, i32
  }
  func.func @transform_7(%arg0: i32, %arg1: memref<8xi32, #tpu.memory_space<smem>>, %arg2: memref<8xi32, #tpu.memory_space<smem>>) -> (i32, i32) {
    %c0_i32 = arith.constant 0 : i32
    %c0_i32_0 = arith.constant 0 : i32
    %c0_i32_1 = arith.constant 0 : i32
    return %c0_i32, %c0_i32_0 : i32, i32
  }
  func.func @transform_8(%arg0: i32, %arg1: memref<8xi32, #tpu.memory_space<smem>>, %arg2: memref<8xi32, #tpu.memory_space<smem>>) -> (i32, i32) {
    %c0_i32 = arith.constant 0 : i32
    %c0_i32_0 = arith.constant 0 : i32
    %c0_i32_1 = arith.constant 0 : i32
    return %c0_i32, %c0_i32_0 : i32, i32
  }
  func.func @transform_9(%arg0: i32, %arg1: memref<8xi32, #tpu.memory_space<smem>>, %arg2: memref<8xi32, #tpu.memory_space<smem>>) -> (i32, i32) {
    %c0_i32 = arith.constant 0 : i32
    %c0_i32_0 = arith.constant 0 : i32
    %c0_i32_1 = arith.constant 0 : i32
    return %c0_i32, %c0_i32_0 : i32, i32
  }
  func.func @transform_10(%arg0: i32, %arg1: memref<8xi32, #tpu.memory_space<smem>>, %arg2: memref<8xi32, #tpu.memory_space<smem>>) -> (i32, i32) {
    %c0_i32 = arith.constant 0 : i32
    %c0_i32_0 = arith.constant 0 : i32
    %c0_i32_1 = arith.constant 0 : i32
    return %c0_i32, %c0_i32_0 : i32, i32
  }
  func.func @transform_11(%arg0: i32, %arg1: memref<8xi32, #tpu.memory_space<smem>>, %arg2: memref<8xi32, #tpu.memory_space<smem>>) -> (i32, i32) {
    %c0_i32 = arith.constant 0 : i32
    %c0_i32_0 = arith.constant 0 : i32
    %c0_i32_1 = arith.constant 0 : i32
    return %c0_i32, %c0_i32_0 : i32, i32
  }
  func.func @transform_12(%arg0: i32, %arg1: memref<8xi32, #tpu.memory_space<smem>>, %arg2: memref<8xi32, #tpu.memory_space<smem>>) -> (i32, i32) {
    %c0_i32 = arith.constant 0 : i32
    %c0_i32_0 = arith.constant 0 : i32
    %c0_i32_1 = arith.constant 0 : i32
    return %c0_i32, %c0_i32_0 : i32, i32
  }
  func.func @transform_13(%arg0: i32, %arg1: memref<8xi32, #tpu.memory_space<smem>>, %arg2: memref<8xi32, #tpu.memory_space<smem>>) -> (i32, i32) {
    %c0_i32 = arith.constant 0 : i32
    %c0_i32_0 = arith.constant 0 : i32
    %c0_i32_1 = arith.constant 0 : i32
    return %c0_i32, %c0_i32_0 : i32, i32
  }
}

</mosaic_0001>

<llo_original>
// kernel: cevncf_forward.1
$region0: #{cevncf_forward.1}
  #allocation0 [shape = 'u32[]', space=smem, size = 0x4, offset = 0x4, fixed_abs, tag = 'smem constant byte address 0x4 - core index']
  #allocation1 [shape = 'u32[144,128]{1,0:T(1,128)}', space=vmem, size = 0x12000, scoped, tag = 'internal scratch']
  #allocation2 [shape = 'f32[8,64]{1,0:T(8,128)}', space=vmem, size = 0x1000, scoped, tag = 'scratch operand']
  #allocation3 [shape = 'f32[8,64]{1,0:T(8,128)}', space=vmem, size = 0x1000, scoped, tag = 'scratch operand']
  #allocation4 [shape = 's32[16]{0}', space=sflag, size = 0x40, scoped, tag = 'scratch operand']
  #allocation5 [shape = 's32[1]{0}', space=sflag, size = 0x4, scoped, tag = 'scoped memory for cevncf_forward.1']
  #allocation6 [shape = 'u8[512]{0}', space=smem, size = 0x200, scoped, tag = 'prefetched SMEM operand 0']
  #allocation7 [shape = 'u8[512]{0}', space=smem, size = 0x200, scoped, tag = 'prefetched SMEM operand 1']
  #allocation8 [shape = 'f32[1,1]{1,0:T(1,128)S(6)}', space=smem, size = 0x200, scoped, tag = 'scoped memory for cevncf_forward.1']
  #allocation18 [shape = 's32[]', space=sflag, size = 0x4, offset = 0, fixed_abs, tag = 'sflag constant byte address 0x0 - dummy sync flag']
  #allocation19 [shape = 's32[]', space=sflag, size = 0x4, offset = 0, fixed_abs, tag = 'sflag constant byte address 0x0 - dummy sync flag']
  #allocation20 [shape = 'u32[]', space=smem, size = 0x4, offset = 0x44, fixed_abs, tag = 'smem constant byte address 0x44 - assertion arg 0']
  #allocation21 [shape = 'u32[]', space=smem, size = 0x4, offset = 0x48, fixed_abs, tag = 'smem constant byte address 0x48 - assertion arg 1']
  #allocation22 [shape = 's32[]', space=sflag, size = 0x4, offset = 0, fixed_abs, tag = 'sflag constant byte address 0x0 - dummy sync flag']
  #allocation23 [shape = 's32[]', space=sflag, size = 0x4, offset = 0, fixed_abs, tag = 'sflag constant byte address 0x0 - dummy sync flag']
  #allocation24 [shape = 's32[]', space=sflag, size = 0x4, offset = 0, fixed_abs, tag = 'sflag constant byte address 0x0 - dummy sync flag']
  #allocation25 [shape = 's32[]', space=sflag, size = 0x4, offset = 0, fixed_abs, tag = 'sflag constant byte address 0x0 - dummy sync flag']
  #allocation26 [shape = 's32[]', space=sflag, size = 0x4, offset = 0, fixed_abs, tag = 'sflag constant byte address 0x0 - dummy sync flag']
  #allocation27 [shape = 's32[]', space=sflag, size = 0x4, offset = 0, fixed_abs, tag = 'sflag constant byte address 0x0 - dummy sync flag']
  #allocation28 [shape = 's32[]', space=sflag, size = 0x4, offset = 0, fixed_abs, tag = 'sflag constant byte address 0x0 - dummy sync flag']
  #allocation29 [shape = 's32[]', space=sflag, size = 0x4, offset = 0, fixed_abs, tag = 'sflag constant byte address 0x0 - dummy sync flag']
  #allocation30 [shape = 's32[]', space=sflag, size = 0x4, offset = 0, fixed_abs, tag = 'sflag constant byte address 0x0 - dummy sync flag']
  #allocation31 [shape = 's32[]', space=sflag, size = 0x4, offset = 0, fixed_abs, tag = 'sflag constant byte address 0x0 - dummy sync flag']
  #allocation32 [shape = 's32[]', space=sflag, size = 0x4, offset = 0, fixed_abs, tag = 'sflag constant byte address 0x0 - dummy sync flag']
  #allocation33 [shape = 's32[]', space=sflag, size = 0x4, offset = 0, fixed_abs, tag = 'sflag constant byte address 0x0 - dummy sync flag']
  #allocation34 [shape = 's32[]', space=sflag, size = 0x4, offset = 0, fixed_abs, tag = 'sflag constant byte address 0x0 - dummy sync flag']
  #allocation35 [shape = 's32[]', space=sflag, size = 0x4, offset = 0, fixed_abs, tag = 'sflag constant byte address 0x0 - dummy sync flag']
  #allocation36 [shape = 's32[]', space=sflag, size = 0x4, offset = 0, fixed_abs, tag = 'sflag constant byte address 0x0 - dummy sync flag']
  #allocation37 [shape = 's32[]', space=sflag, size = 0x4, offset = 0, fixed_abs, tag = 'sflag constant byte address 0x0 - dummy sync flag']
  #allocation38 [shape = 's32[]', space=sflag, size = 0x4, offset = 0, fixed_abs, tag = 'sflag constant byte address 0x0 - dummy sync flag']
  #allocation39 [shape = 's32[]', space=sflag, size = 0x4, offset = 0, fixed_abs, tag = 'sflag constant byte address 0x0 - dummy sync flag']
  #allocation40 [shape = 's32[]', space=sflag, size = 0x4, offset = 0, fixed_abs, tag = 'sflag constant byte address 0x0 - dummy sync flag']
  #allocation41 [shape = 's32[]', space=sflag, size = 0x4, offset = 0, fixed_abs, tag = 'sflag constant byte address 0x0 - dummy sync flag']
  #allocation42 [shape = 's32[]', space=sflag, size = 0x4, offset = 0, fixed_abs, tag = 'sflag constant byte address 0x0 - dummy sync flag']
  #allocation43 [shape = 's32[]', space=sflag, size = 0x4, offset = 0, fixed_abs, tag = 'sflag constant byte address 0x0 - dummy sync flag']
  #allocation44 [shape = 's32[]', space=sflag, size = 0x4, offset = 0, fixed_abs, tag = 'sflag constant byte address 0x0 - dummy sync flag']
  #allocation45 [shape = 's32[]', space=sflag, size = 0x4, offset = 0, fixed_abs, tag = 'sflag constant byte address 0x0 - dummy sync flag']
  #allocation46 [shape = 's32[]', space=sflag, size = 0x4, offset = 0, fixed_abs, tag = 'sflag constant byte address 0x0 - dummy sync flag']
  #allocation47 [shape = 's32[]', space=sflag, size = 0x4, offset = 0, fixed_abs, tag = 'sflag constant byte address 0x0 - dummy sync flag']
  #allocation48 [shape = 's32[]', space=sflag, size = 0x4, offset = 0, fixed_abs, tag = 'sflag constant byte address 0x0 - dummy sync flag']
  #allocation49 [shape = 's32[]', space=sflag, size = 0x4, offset = 0, fixed_abs, tag = 'sflag constant byte address 0x0 - dummy sync flag']
  #allocation50 [shape = 's32[]', space=sflag, size = 0x4, offset = 0, fixed_abs, tag = 'sflag constant byte address 0x0 - dummy sync flag']
  #allocation51 [shape = 's32[]', space=sflag, size = 0x4, offset = 0, fixed_abs, tag = 'sflag constant byte address 0x0 - dummy sync flag']
  %s0 = inlined_call_operand.vmem [shape: s32[8], index: 0, kind: input, shape index: {}]
  %s1 = inlined_call_operand.vmem [shape: s32[8], index: 1, kind: input, shape index: {}]
  %s2 = inlined_call_operand.hbm [shape: f32[50,64], index: 2, kind: input, shape index: {}]
  %s3 = inlined_call_operand.hbm [shape: f32[60,64], index: 3, kind: input, shape index: {}]
  %s4 = inlined_call_operand.vmem [shape: f32[8,128], index: 4, kind: input, shape index: {}]
  %s5 = inlined_call_operand.hbm [shape: f32[128,256], index: 5, kind: input, shape index: {}]
  %s6 = inlined_call_operand.vmem [shape: f32[1,256], index: 6, kind: input, shape index: {}]
  %s7 = inlined_call_operand.vmem [shape: f32[1,128], index: 7, kind: input, shape index: {}]
  %s8 = inlined_call_operand.<no memory space> [shape: f32[1,1], index: 8, kind: input, shape index: {}]
  %s9 = inlined_call_operand.hbm [shape: f32[128,256], index: 9, kind: input, shape index: {}]
  %s10 = inlined_call_operand.vmem [shape: f32[1,256], index: 10, kind: input, shape index: {}]
  %s11 = inlined_call_operand.vmem [shape: f32[8,1], index: 11, kind: output, shape index: {0}]
  %s12 = inlined_call_operand.hbm [shape: f32[8,128], index: 12, kind: output, shape index: {1}]
  %s13 = inlined_call_operand.hbm [shape: f32[8,128], index: 13, kind: output, shape index: {2}]
  %s14 = inlined_call_operand.vmem [shape: f32[8,128], index: 14, kind: output, shape index: {3}]
  %s15 = inlined_call_operand.hbm [shape: f32[8,128], index: 15, kind: output, shape index: {4}]
  %16 = xla_tuple %s11, %s12, %s13, %s14, %s15
  %s17 = sld [smem:[#allocation0]]
  $region142: #{cevncf_forward.1} parent=0
    _
  %s19 = ssub.s32 1, %s17
  %s20 = scalar_select 0, %s19, %s17
  %s21 = sshll.u32 %s0, 4
  %s22 = int_to_ptr.vmem [resolvable:$true] %s21
  %24 = dma.vmem_to_smem %s22, 16, [#allocation6], [#allocation5]
  %s25 = sshll.u32 %s1, 4
  %s26 = int_to_ptr.vmem [resolvable:$true] %s25
  %28 = dma.vmem_to_smem %s26, 16, [#allocation7], [#allocation5]
  %29 = sst [smem:[#allocation8]] %s8
  %30 = dma.done [#allocation5], 32
  %31 = sfence
  $region1: #{cevncf_forward.1} parent=0
    #allocation9 [shape = 'u8[131072]{0}', space=vmem, size = 0x20000, scoped, tag = 'input window, operand 5, single buffered']
    #allocation10 [shape = 's32[1]{0}', space=sflag, size = 0x4, scoped, tag = 'scoped memory for cevncf_forward.1']
    #allocation11 [shape = 's32[1]{0}', space=sflag, size = 0x4, scoped, tag = 'scoped memory for cevncf_forward.1']
    #allocation12 [shape = 'u8[131072]{0}', space=vmem, size = 0x20000, scoped, tag = 'input window, operand 9, single buffered']
    #allocation13 [shape = 's32[1]{0}', space=sflag, size = 0x4, scoped, tag = 'scoped memory for cevncf_forward.1']
    #allocation14 [shape = 'u8[4096]{0}', space=vmem, size = 0x1000, scoped, tag = 'output window, operand 1, single buffered']
    #allocation15 [shape = 'u8[4096]{0}', space=vmem, size = 0x1000, scoped, tag = 'output window, operand 2, single buffered']
    #allocation16 [shape = 's32[1]{0}', space=sflag, size = 0x4, scoped, tag = 'scoped memory for cevncf_forward.1']
    #allocation17 [shape = 'u8[4096]{0}', space=vmem, size = 0x1000, scoped, tag = 'output window, operand 4, single buffered']
    %32 = vsyncpa [#allocation10], 0
    %33 = vsyncpa [#allocation13], 0
    %34 = vsyncpa [#allocation11], 0
    %35 = vsyncpa [#allocation16], 0
    // Predicated region
    $region2: #{cevncf_forward.1} parent=1 // pred_check
      _
    $region3: #{cevncf_forward.1} parent=1 // pred_check_branch
      %37 = sbr.rel (0) target = $region5
    $region4: #{cevncf_forward.1} parent=1 // pred_region
      _
    $region5: #{cevncf_forward.1} parent=1 // pred_fallthru
      _
    // Predicated region
    $region6: #{cevncf_forward.1} parent=1 // pred_check
      _
    $region7: #{cevncf_forward.1} parent=1 // pred_check_branch
      %39 = sbr.rel (0) target = $region9
    $region8: #{cevncf_forward.1} parent=1 // pred_region
      %s41 = ssub.s32 4096, 4096
      %42 = vsyncadd [#allocation10], %s41
      %s43 = sshll.u32 [#allocation9], 4
      %s44 = int_to_ptr.vmem [resolvable:$true] %s43
      %49 = dma.hbm_to_vmem [thread:$0]  %s5, 4096, %s44, [#allocation10], 256, 256, 16
    $region9: #{cevncf_forward.1} parent=1 // pred_fallthru
      _
    // Predicated region
    $region10: #{cevncf_forward.1} parent=1 // pred_check
      _
    $region11: #{cevncf_forward.1} parent=1 // pred_check_branch
      %51 = sbr.rel (0) target = $region13
    $region12: #{cevncf_forward.1} parent=1 // pred_region
      _
    $region13: #{cevncf_forward.1} parent=1 // pred_fallthru
      _
    // Predicated region
    $region14: #{cevncf_forward.1} parent=1 // pred_check
      _
    $region15: #{cevncf_forward.1} parent=1 // pred_check_branch
      %53 = sbr.rel (0) target = $region17
    $region16: #{cevncf_forward.1} parent=1 // pred_region
      _
    $region17: #{cevncf_forward.1} parent=1 // pred_fallthru
      _
    // Predicated region
    $region18: #{cevncf_forward.1} parent=1 // pred_check
      _
    $region19: #{cevncf_forward.1} parent=1 // pred_check_branch
      %55 = sbr.rel (0) target = $region21
    $region20: #{cevncf_forward.1} parent=1 // pred_region
      _
    $region21: #{cevncf_forward.1} parent=1 // pred_fallthru
      _
    // Predicated region
    $region22: #{cevncf_forward.1} parent=1 // pred_check
      _
    $region23: #{cevncf_forward.1} parent=1 // pred_check_branch
      %57 = sbr.rel (0) target = $region25
    $region24: #{cevncf_forward.1} parent=1 // pred_region
      %s59 = ssub.s32 4096, 4096
      %60 = vsyncadd [#allocation13], %s59
      %s61 = sshll.u32 [#allocation12], 4
      %s62 = int_to_ptr.vmem [resolvable:$true] %s61
      %67 = dma.hbm_to_vmem [thread:$0]  %s9, 4096, %s62, [#allocation13], 256, 256, 16
    $region25: #{cevncf_forward.1} parent=1 // pred_fallthru
      _
    // Predicated region
    $region26: #{cevncf_forward.1} parent=1 // pred_check
      _
    $region27: #{cevncf_forward.1} parent=1 // pred_check_branch
      %69 = sbr.rel (0) target = $region29
    $region28: #{cevncf_forward.1} parent=1 // pred_region
      _
    $region29: #{cevncf_forward.1} parent=1 // pred_fallthru
      _
    // Predicated region
    $region30: #{cevncf_forward.1} parent=1 // pred_check
      _
    $region31: #{cevncf_forward.1} parent=1 // pred_check_branch
      %71 = sbr.rel (0) target = $region33
    $region32: #{cevncf_forward.1} parent=1 // pred_region
      %72 = dma.done [#allocation10], 4096
    $region33: #{cevncf_forward.1} parent=1 // pred_fallthru
      _
    // Predicated region
    $region34: #{cevncf_forward.1} parent=1 // pred_check
      _
    $region35: #{cevncf_forward.1} parent=1 // pred_check_branch
      %74 = sbr.rel (0) target = $region37
    $region36: #{cevncf_forward.1} parent=1 // pred_region
      %75 = dma.done [#allocation13], 4096
    $region37: #{cevncf_forward.1} parent=1 // pred_fallthru
      _
    %s76 = sld [smem:[#allocation6]]
    %s77 = sld [smem:[#allocation7]]
    %s78 = smul.addr %s76, 16
    %s79 = scalar_lea.hbm %s2, %s78
    // Predicated region
    $region38: #{cevncf_forward.1} parent=1 // pred_check
      _
    $region39: #{cevncf_forward.1} parent=1 // pred_check_branch
      %81 = sbr.rel target = $region41
    $region40: #{cevncf_forward.1} parent=1 // pred_region
      %82 = sst [smem:[#allocation20]] [#allocation19]
      %83 = sst [smem:[#allocation21]] [#allocation18]
    $region41: #{cevncf_forward.1} parent=1 // pred_fallthru
      _
    %85 = shalt.err (0)
    %s87 = sshll.u32 [#allocation2], 4
    %s88 = int_to_ptr.vmem [resolvable:$true] %s87
    %90 = dma.hbm_to_vmem [thread:$0]  %s79, 16, %s88, [#allocation4]
    %s91 = smul.addr %s77, 16
    %s92 = scalar_lea.hbm %s3, %s91
    %s93 = scalar_lea.sflag [#allocation4], 8
    // Predicated region
    $region42: #{cevncf_forward.1} parent=1 // pred_check
      _
    $region43: #{cevncf_forward.1} parent=1 // pred_check_branch
      %95 = sbr.rel target = $region45
    $region44: #{cevncf_forward.1} parent=1 // pred_region
      %96 = sst [smem:[#allocation20]] [#allocation23]
      %97 = sst [smem:[#allocation21]] [#allocation22]
    $region45: #{cevncf_forward.1} parent=1 // pred_fallthru
      _
    %99 = shalt.err (0)
    %s101 = sshll.u32 [#allocation3], 4
    %s102 = int_to_ptr.vmem [resolvable:$true] %s101
    %104 = dma.hbm_to_vmem [thread:$0]  %s92, 16, %s102, %s93
    %s105 = sld [smem:[#allocation6 + $0x1]]
    %s106 = sld [smem:[#allocation7 + $0x1]]
    %s107 = smul.addr %s105, 16
    %s108 = scalar_lea.hbm %s2, %s107
    %s109 = scalar_lea.vmem [#allocation2], 1
    %s110 = scalar_lea.sflag [#allocation4], 1
    // Predicated region
    $region46: #{cevncf_forward.1} parent=1 // pred_check
      _
    $region47: #{cevncf_forward.1} parent=1 // pred_check_branch
      %112 = sbr.rel target = $region49
    $region48: #{cevncf_forward.1} parent=1 // pred_region
      %113 = sst [smem:[#allocation20]] [#allocation25]
      %114 = sst [smem:[#allocation21]] [#allocation24]
    $region49: #{cevncf_forward.1} parent=1 // pred_fallthru
      _
    %116 = shalt.err (0)
    %s118 = sshll.u32 %s109, 4
    %s119 = int_to_ptr.vmem [resolvable:$true] %s118
    %121 = dma.hbm_to_vmem [thread:$0]  %s108, 16, %s119, %s110
    %s122 = smul.addr %s106, 16
    %s123 = scalar_lea.hbm %s3, %s122
    %s124 = scalar_lea.vmem [#allocation3], 1
    %s125 = scalar_lea.sflag [#allocation4], 9
    // Predicated region
    $region50: #{cevncf_forward.1} parent=1 // pred_check
      _
    $region51: #{cevncf_forward.1} parent=1 // pred_check_branch
      %127 = sbr.rel target = $region53
    $region52: #{cevncf_forward.1} parent=1 // pred_region
      %128 = sst [smem:[#allocation20]] [#allocation27]
      %129 = sst [smem:[#allocation21]] [#allocation26]
    $region53: #{cevncf_forward.1} parent=1 // pred_fallthru
      _
    %131 = shalt.err (0)
    %s133 = sshll.u32 %s124, 4
    %s134 = int_to_ptr.vmem [resolvable:$true] %s133
    %136 = dma.hbm_to_vmem [thread:$0]  %s123, 16, %s134, %s125
    %s137 = sld [smem:[#allocation6 + $0x2]]
    %s138 = sld [smem:[#allocation7 + $0x2]]
    %s139 = smul.addr %s137, 16
    %s140 = scalar_lea.hbm %s2, %s139
    %s141 = scalar_lea.vmem [#allocation2], 2
    %s142 = scalar_lea.sflag [#allocation4], 2
    // Predicated region
    $region54: #{cevncf_forward.1} parent=1 // pred_check
      _
    $region55: #{cevncf_forward.1} parent=1 // pred_check_branch
      %144 = sbr.rel target = $region57
    $region56: #{cevncf_forward.1} parent=1 // pred_region
      %145 = sst [smem:[#allocation20]] [#allocation29]
      %146 = sst [smem:[#allocation21]] [#allocation28]
    $region57: #{cevncf_forward.1} parent=1 // pred_fallthru
      _
    %148 = shalt.err (0)
    %s150 = sshll.u32 %s141, 4
    %s151 = int_to_ptr.vmem [resolvable:$true] %s150
    %153 = dma.hbm_to_vmem [thread:$0]  %s140, 16, %s151, %s142
    %s154 = smul.addr %s138, 16
    %s155 = scalar_lea.hbm %s3, %s154
    %s156 = scalar_lea.vmem [#allocation3], 2
    %s157 = scalar_lea.sflag [#allocation4], 10
    // Predicated region
    $region58: #{cevncf_forward.1} parent=1 // pred_check
      _
    $region59: #{cevncf_forward.1} parent=1 // pred_check_branch
      %159 = sbr.rel target = $region61
    $region60: #{cevncf_forward.1} parent=1 // pred_region
      %160 = sst [smem:[#allocation20]] [#allocation31]
      %161 = sst [smem:[#allocation21]] [#allocation30]
    $region61: #{cevncf_forward.1} parent=1 // pred_fallthru
      _
    %163 = shalt.err (0)
    %s165 = sshll.u32 %s156, 4
    %s166 = int_to_ptr.vmem [resolvable:$true] %s165
    %168 = dma.hbm_to_vmem [thread:$0]  %s155, 16, %s166, %s157
    %s169 = sld [smem:[#allocation6 + $0x3]]
    %s170 = sld [smem:[#allocation7 + $0x3]]
    %s171 = smul.addr %s169, 16
    %s172 = scalar_lea.hbm %s2, %s171
    %s173 = scalar_lea.vmem [#allocation2], 3
    %s174 = scalar_lea.sflag [#allocation4], 3
    // Predicated region
    $region62: #{cevncf_forward.1} parent=1 // pred_check
      _
    $region63: #{cevncf_forward.1} parent=1 // pred_check_branch
      %176 = sbr.rel target = $region65
    $region64: #{cevncf_forward.1} parent=1 // pred_region
      %177 = sst [smem:[#allocation20]] [#allocation33]
      %178 = sst [smem:[#allocation21]] [#allocation32]
    $region65: #{cevncf_forward.1} parent=1 // pred_fallthru
      _
    %180 = shalt.err (0)
    %s182 = sshll.u32 %s173, 4
    %s183 = int_to_ptr.vmem [resolvable:$true] %s182
    %185 = dma.hbm_to_vmem [thread:$0]  %s172, 16, %s183, %s174
    %s186 = smul.addr %s170, 16
    %s187 = scalar_lea.hbm %s3, %s186
    %s188 = scalar_lea.vmem [#allocation3], 3
    %s189 = scalar_lea.sflag [#allocation4], 11
    // Predicated region
    $region66: #{cevncf_forward.1} parent=1 // pred_check
      _
    $region67: #{cevncf_forward.1} parent=1 // pred_check_branch
      %191 = sbr.rel target = $region69
    $region68: #{cevncf_forward.1} parent=1 // pred_region
      %192 = sst [smem:[#allocation20]] [#allocation35]
      %193 = sst [smem:[#allocation21]] [#allocation34]
    $region69: #{cevncf_forward.1} parent=1 // pred_fallthru
      _
    %195 = shalt.err (0)
    %s197 = sshll.u32 %s188, 4
    %s198 = int_to_ptr.vmem [resolvable:$true] %s197
    %200 = dma.hbm_to_vmem [thread:$0]  %s187, 16, %s198, %s189
    %s201 = sld [smem:[#allocation6 + $0x4]]
    %s202 = sld [smem:[#allocation7 + $0x4]]
    %s203 = smul.addr %s201, 16
    %s204 = scalar_lea.hbm %s2, %s203
    %s205 = scalar_lea.vmem [#allocation2], 4
    %s206 = scalar_lea.sflag [#allocation4], 4
    // Predicated region
    $region70: #{cevncf_forward.1} parent=1 // pred_check
      _
    $region71: #{cevncf_forward.1} parent=1 // pred_check_branch
      %208 = sbr.rel target = $region73
    $region72: #{cevncf_forward.1} parent=1 // pred_region
      %209 = sst [smem:[#allocation20]] [#allocation37]
      %210 = sst [smem:[#allocation21]] [#allocation36]
    $region73: #{cevncf_forward.1} parent=1 // pred_fallthru
      _
    %212 = shalt.err (0)
    %s214 = sshll.u32 %s205, 4
    %s215 = int_to_ptr.vmem [resolvable:$true] %s214
    %217 = dma.hbm_to_vmem [thread:$0]  %s204, 16, %s215, %s206
    %s218 = smul.addr %s202, 16
    %s219 = scalar_lea.hbm %s3, %s218
    %s220 = scalar_lea.vmem [#allocation3], 4
    %s221 = scalar_lea.sflag [#allocation4], 12
    // Predicated region
    $region74: #{cevncf_forward.1} parent=1 // pred_check
      _
    $region75: #{cevncf_forward.1} parent=1 // pred_check_branch
      %223 = sbr.rel target = $region77
    $region76: #{cevncf_forward.1} parent=1 // pred_region
      %224 = sst [smem:[#allocation20]] [#allocation39]
      %225 = sst [smem:[#allocation21]] [#allocation38]
    $region77: #{cevncf_forward.1} parent=1 // pred_fallthru
      _
    %227 = shalt.err (0)
    %s229 = sshll.u32 %s220, 4
    %s230 = int_to_ptr.vmem [resolvable:$true] %s229
    %232 = dma.hbm_to_vmem [thread:$0]  %s219, 16, %s230, %s221
    %s233 = sld [smem:[#allocation6 + $0x5]]
    %s234 = sld [smem:[#allocation7 + $0x5]]
    %s235 = smul.addr %s233, 16
    %s236 = scalar_lea.hbm %s2, %s235
    %s237 = scalar_lea.vmem [#allocation2], 5
    %s238 = scalar_lea.sflag [#allocation4], 5
    // Predicated region
    $region78: #{cevncf_forward.1} parent=1 // pred_check
      _
    $region79: #{cevncf_forward.1} parent=1 // pred_check_branch
      %240 = sbr.rel target = $region81
    $region80: #{cevncf_forward.1} parent=1 // pred_region
      %241 = sst [smem:[#allocation20]] [#allocation41]
      %242 = sst [smem:[#allocation21]] [#allocation40]
    $region81: #{cevncf_forward.1} parent=1 // pred_fallthru
      _
    %244 = shalt.err (0)
    %s246 = sshll.u32 %s237, 4
    %s247 = int_to_ptr.vmem [resolvable:$true] %s246
    %249 = dma.hbm_to_vmem [thread:$0]  %s236, 16, %s247, %s238
    %s250 = smul.addr %s234, 16
    %s251 = scalar_lea.hbm %s3, %s250
    %s252 = scalar_lea.vmem [#allocation3], 5
    %s253 = scalar_lea.sflag [#allocation4], 13
    // Predicated region
    $region82: #{cevncf_forward.1} parent=1 // pred_check
      _
    $region83: #{cevncf_forward.1} parent=1 // pred_check_branch
      %255 = sbr.rel target = $region85
    $region84: #{cevncf_forward.1} parent=1 // pred_region
      %256 = sst [smem:[#allocation20]] [#allocation43]
      %257 = sst [smem:[#allocation21]] [#allocation42]
    $region85: #{cevncf_forward.1} parent=1 // pred_fallthru
      _
    %259 = shalt.err (0)
    %s261 = sshll.u32 %s252, 4
    %s262 = int_to_ptr.vmem [resolvable:$true] %s261
    %264 = dma.hbm_to_vmem [thread:$0]  %s251, 16, %s262, %s253
    %s265 = sld [smem:[#allocation6 + $0x6]]
    %s266 = sld [smem:[#allocation7 + $0x6]]
    %s267 = smul.addr %s265, 16
    %s268 = scalar_lea.hbm %s2, %s267
    %s269 = scalar_lea.vmem [#allocation2], 6
    %s270 = scalar_lea.sflag [#allocation4], 6
    // Predicated region
    $region86: #{cevncf_forward.1} parent=1 // pred_check
      _
    $region87: #{cevncf_forward.1} parent=1 // pred_check_branch
      %272 = sbr.rel target = $region89
    $region88: #{cevncf_forward.1} parent=1 // pred_region
      %273 = sst [smem:[#allocation20]] [#allocation45]
      %274 = sst [smem:[#allocation21]] [#allocation44]
    $region89: #{cevncf_forward.1} parent=1 // pred_fallthru
      _
    %276 = shalt.err (0)
    %s278 = sshll.u32 %s269, 4
    %s279 = int_to_ptr.vmem [resolvable:$true] %s278
    %281 = dma.hbm_to_vmem [thread:$0]  %s268, 16, %s279, %s270
    %s282 = smul.addr %s266, 16
    %s283 = scalar_lea.hbm %s3, %s282
    %s284 = scalar_lea.vmem [#allocation3], 6
    %s285 = scalar_lea.sflag [#allocation4], 14
    // Predicated region
    $region90: #{cevncf_forward.1} parent=1 // pred_check
      _
    $region91: #{cevncf_forward.1} parent=1 // pred_check_branch
      %287 = sbr.rel target = $region93
    $region92: #{cevncf_forward.1} parent=1 // pred_region
      %288 = sst [smem:[#allocation20]] [#allocation47]
      %289 = sst [smem:[#allocation21]] [#allocation46]
    $region93: #{cevncf_forward.1} parent=1 // pred_fallthru
      _
    %291 = shalt.err (0)
    %s293 = sshll.u32 %s284, 4
    %s294 = int_to_ptr.vmem [resolvable:$true] %s293
    %296 = dma.hbm_to_vmem [thread:$0]  %s283, 16, %s294, %s285
    %s297 = sld [smem:[#allocation6 + $0x7]]
    %s298 = sld [smem:[#allocation7 + $0x7]]
    %s299 = smul.addr %s297, 16
    %s300 = scalar_lea.hbm %s2, %s299
    %s301 = scalar_lea.vmem [#allocation2], 7
    %s302 = scalar_lea.sflag [#allocation4], 7
    // Predicated region
    $region94: #{cevncf_forward.1} parent=1 // pred_check
      _
    $region95: #{cevncf_forward.1} parent=1 // pred_check_branch
      %304 = sbr.rel target = $region97
    $region96: #{cevncf_forward.1} parent=1 // pred_region
      %305 = sst [smem:[#allocation20]] [#allocation49]
      %306 = sst [smem:[#allocation21]] [#allocation48]
    $region97: #{cevncf_forward.1} parent=1 // pred_fallthru
      _
    %308 = shalt.err (0)
    %s310 = sshll.u32 %s301, 4
    %s311 = int_to_ptr.vmem [resolvable:$true] %s310
    %313 = dma.hbm_to_vmem [thread:$0]  %s300, 16, %s311, %s302
    %s314 = smul.addr %s298, 16
    %s315 = scalar_lea.hbm %s3, %s314
    %s316 = scalar_lea.vmem [#allocation3], 7
    %s317 = scalar_lea.sflag [#allocation4], 15
    // Predicated region
    $region98: #{cevncf_forward.1} parent=1 // pred_check
      _
    $region99: #{cevncf_forward.1} parent=1 // pred_check_branch
      %319 = sbr.rel target = $region101
    $region100: #{cevncf_forward.1} parent=1 // pred_region
      %320 = sst [smem:[#allocation20]] [#allocation51]
      %321 = sst [smem:[#allocation21]] [#allocation50]
    $region101: #{cevncf_forward.1} parent=1 // pred_fallthru
      _
    %323 = shalt.err (0)
    %s325 = sshll.u32 %s316, 4
    %s326 = int_to_ptr.vmem [resolvable:$true] %s325
    %328 = dma.hbm_to_vmem [thread:$0]  %s315, 16, %s326, %s317
    %s329 = smul.u32 1, 1
    %s330 = sshll.u32 %s329, 4
    %331 = dma.done [#allocation4], %s330
    %s332 = sshll.u32 %s329, 4
    %333 = dma.done %s93, %s332
    %s334 = sshll.u32 %s329, 4
    %335 = dma.done %s110, %s334
    %s336 = sshll.u32 %s329, 4
    %337 = dma.done %s125, %s336
    %s338 = sshll.u32 %s329, 4
    %339 = dma.done %s142, %s338
    %s340 = sshll.u32 %s329, 4
    %341 = dma.done %s157, %s340
    %s342 = sshll.u32 %s329, 4
    %343 = dma.done %s174, %s342
    %s344 = sshll.u32 %s329, 4
    %345 = dma.done %s189, %s344
    %s346 = sshll.u32 %s329, 4
    %347 = dma.done %s206, %s346
    %s348 = sshll.u32 %s329, 4
    %349 = dma.done %s221, %s348
    %s350 = sshll.u32 %s329, 4
    %351 = dma.done %s238, %s350
    %s352 = sshll.u32 %s329, 4
    %353 = dma.done %s253, %s352
    %s354 = sshll.u32 %s329, 4
    %355 = dma.done %s270, %s354
    %s356 = sshll.u32 %s329, 4
    %357 = dma.done %s285, %s356
    %s358 = sshll.u32 %s329, 4
    %359 = dma.done %s302, %s358
    %s360 = sshll.u32 %s329, 4
    %361 = dma.done %s317, %s360
    %v362 = vld [vmem:[#allocation2] sm:$0xff]
    %v363 = vld [vmem:[#allocation3] sm:$0xff]
    %365 = vrot.lane.b32.xlu0 %v363, 64
    %v366 = vpop.permute.xlu0 %365
    %vm368 = vcmask 523264
    %v369 = vsel %vm368, %v362, %v366
    %v370 = vld [vmem:[#allocation9] sm:$0xff]
    %v371 = vld [vmem:[#allocation9 + $0x8] sm:$0xff]
    %v372 = vld [vmem:[#allocation9 + $0x10] sm:$0xff]
    %v373 = vld [vmem:[#allocation9 + $0x18] sm:$0xff]
    %v374 = vld [vmem:[#allocation9 + $0x20] sm:$0xff]
    %v375 = vld [vmem:[#allocation9 + $0x28] sm:$0xff]
    %v376 = vld [vmem:[#allocation9 + $0x30] sm:$0xff]
    %v377 = vld [vmem:[#allocation9 + $0x38] sm:$0xff]
    %v378 = vld [vmem:[#allocation9 + $0x40] sm:$0xff]
    %v379 = vld [vmem:[#allocation9 + $0x48] sm:$0xff]
    %v380 = vld [vmem:[#allocation9 + $0x50] sm:$0xff]
    %v381 = vld [vmem:[#allocation9 + $0x58] sm:$0xff]
    %v382 = vld [vmem:[#allocation9 + $0x60] sm:$0xff]
    %v383 = vld [vmem:[#allocation9 + $0x68] sm:$0xff]
    %v384 = vld [vmem:[#allocation9 + $0x70] sm:$0xff]
    %v385 = vld [vmem:[#allocation9 + $0x78] sm:$0xff]
    %v386 = vld [vmem:[#allocation9 + $0x80] sm:$0xff]
    %v387 = vld [vmem:[#allocation9 + $0x88] sm:$0xff]
    %v388 = vld [vmem:[#allocation9 + $0x90] sm:$0xff]
    %v389 = vld [vmem:[#allocation9 + $0x98] sm:$0xff]
    %v390 = vld [vmem:[#allocation9 + $0xa0] sm:$0xff]
    %v391 = vld [vmem:[#allocation9 + $0xa8] sm:$0xff]
    %v392 = vld [vmem:[#allocation9 + $0xb0] sm:$0xff]
    %v393 = vld [vmem:[#allocation9 + $0xb8] sm:$0xff]
    %v394 = vld [vmem:[#allocation9 + $0xc0] sm:$0xff]
    %v395 = vld [vmem:[#allocation9 + $0xc8] sm:$0xff]
    %v396 = vld [vmem:[#allocation9 + $0xd0] sm:$0xff]
    %v397 = vld [vmem:[#allocation9 + $0xd8] sm:$0xff]
    %v398 = vld [vmem:[#allocation9 + $0xe0] sm:$0xff]
    %v399 = vld [vmem:[#allocation9 + $0xe8] sm:$0xff]
    %v400 = vld [vmem:[#allocation9 + $0xf0] sm:$0xff]
    %v401 = vld [vmem:[#allocation9 + $0xf8] sm:$0xff]
    %v402 = vld [vmem:[%s6] sm:$0x3]
    %v404 = vlaneseq
    %v405 = vshrl.u32 %v404, 7
    %v406 = vsub.s32 0, %v405
    %v407 = vrot.slane %v402, %v406
    %v408 = vlaneseq
    %v409 = vshrl.u32 %v408, 7
    %v410 = vsub.s32 1, %v409
    %v411 = vrot.slane %v402, %v410
    %414 = vmatprep.subr.mxu0 %v371
    %415 = vmatpush1.msra.mxu0 %v370
    %416 = vmatprep.subr.mxu0 %v373
    %417 = vmatpush1.msra.mxu0 %v372
    %418 = vmatprep.subr.mxu0 %v375
    %419 = vmatpush1.msra.mxu0 %v374
    %420 = vmatprep.subr.mxu0 %v377
    %421 = vmatpush1.msra.mxu0 %v376
    %422 = vmatprep.subr.mxu0 %v379
    %423 = vmatpush1.msra.mxu0 %v378
    %424 = vmatprep.subr.mxu0 %v381
    %425 = vmatpush1.msra.mxu0 %v380
    %426 = vmatprep.subr.mxu0 %v383
    %427 = vmatpush1.msra.mxu0 %v382
    %428 = vmatprep.subr.mxu0 %v385
    %429 = vmatpush1.msra.mxu0 %v384
    %430 = vmatprep.subr.mxu0 %v387
    %431 = vmatpush1.msra.mxu0 %v386
    %432 = vmatprep.subr.mxu0 %v389
    %433 = vmatpush1.msra.mxu0 %v388
    %434 = vmatprep.subr.mxu0 %v391
    %435 = vmatpush1.msra.mxu0 %v390
    %436 = vmatprep.subr.mxu0 %v393
    %437 = vmatpush1.msra.mxu0 %v392
    %438 = vmatprep.subr.mxu0 %v395
    %439 = vmatpush1.msra.mxu0 %v394
    %440 = vmatprep.subr.mxu0 %v397
    %441 = vmatpush1.msra.mxu0 %v396
    %442 = vmatprep.subr.mxu0 %v399
    %443 = vmatpush1.msra.mxu0 %v398
    %444 = vmatprep.subr.mxu0 %v401
    %445 = vmatpush1.msra.mxu0 %v400
    %446 = vmatprep.subr.mxu0 0.0
    %447 = vmatpush1.msra.mxu0 0.0
    %448 = vmatprep.subr.mxu0 0.0
    %449 = vmatpush1.msra.mxu0 0.0
    %450 = vmatprep.subr.mxu0 0.0
    %451 = vmatpush1.msra.mxu0 0.0
    %452 = vmatprep.subr.mxu0 0.0
    %453 = vmatpush1.msra.mxu0 0.0
    %454 = vmatprep.subr.mxu0 0.0
    %455 = vmatpush1.msra.mxu0 0.0
    %456 = vmatprep.subr.mxu0 0.0
    %457 = vmatpush1.msra.mxu0 0.0
    %458 = vmatprep.subr.mxu0 0.0
    %459 = vmatpush1.msra.mxu0 0.0
    %460 = vmatprep.subr.mxu0 0.0
    %461 = vmatpush1.msra.mxu0 0.0
    %462 = vmatprep.subr.mxu0 0.0
    %463 = vmatpush1.msra.mxu0 0.0
    %464 = vmatprep.subr.mxu0 0.0
    %465 = vmatpush1.msra.mxu0 0.0
    %466 = vmatprep.subr.mxu0 0.0
    %467 = vmatpush1.msra.mxu0 0.0
    %468 = vmatprep.subr.mxu0 0.0
    %469 = vmatpush1.msra.mxu0 0.0
    %470 = vmatprep.subr.mxu0 0.0
    %471 = vmatpush1.msra.mxu0 0.0
    %472 = vmatprep.subr.mxu0 0.0
    %473 = vmatpush1.msra.mxu0 0.0
    %474 = vmatprep.subr.mxu0 0.0
    %475 = vmatpush1.msra.mxu0 0.0
    %476 = vmatprep.subr.mxu0 0.0
    %477 = vmatpush1.msra.mxu0 0.0
    %478 = vmatprep.mubr.f32.mxu0 0.0
    %479 = vmatmul.mubr.f32.gmra.mrb[0].mxu0 %v369
    %v480 = vpop.f32.mrb[0].mxu0
    %v481 = vadd.f32 %v407, %v480
    %v482 = vpop.f32.mrb[0].mxu0
    %v483 = vadd.f32 %v411, %v482
    %484 = vdwg.mxu0
    %v485 = vmax.f32 %v481, 0.0
    %v486 = vtanh.pop %v483
    %v487 = vmul.f32 %v486, 3.0
    %v488 = vld [vmem:[%s4] sm:$0xff]
    %v489 = vmul.f32 %v487, 0.5
    %v490 = vmul.f32 %v489, 1.442695
    %v491 = vpow.pop %v490
    %v492 = vmul.f32 %v488, %v491
    %v493 = vadd.f32 %v485, %v492
    %v494 = vld [vmem:[#allocation12] sm:$0xff]
    %v495 = vld [vmem:[#allocation12 + $0x8] sm:$0xff]
    %v496 = vld [vmem:[#allocation12 + $0x10] sm:$0xff]
    %v497 = vld [vmem:[#allocation12 + $0x18] sm:$0xff]
    %v498 = vld [vmem:[#allocation12 + $0x20] sm:$0xff]
    %v499 = vld [vmem:[#allocation12 + $0x28] sm:$0xff]
    %v500 = vld [vmem:[#allocation12 + $0x30] sm:$0xff]
    %v501 = vld [vmem:[#allocation12 + $0x38] sm:$0xff]
    %v502 = vld [vmem:[#allocation12 + $0x40] sm:$0xff]
    %v503 = vld [vmem:[#allocation12 + $0x48] sm:$0xff]
    %v504 = vld [vmem:[#allocation12 + $0x50] sm:$0xff]
    %v505 = vld [vmem:[#allocation12 + $0x58] sm:$0xff]
    %v506 = vld [vmem:[#allocation12 + $0x60] sm:$0xff]
    %v507 = vld [vmem:[#allocation12 + $0x68] sm:$0xff]
    %v508 = vld [vmem:[#allocation12 + $0x70] sm:$0xff]
    %v509 = vld [vmem:[#allocation12 + $0x78] sm:$0xff]
    %v510 = vld [vmem:[#allocation12 + $0x80] sm:$0xff]
    %v511 = vld [vmem:[#allocation12 + $0x88] sm:$0xff]
    %v512 = vld [vmem:[#allocation12 + $0x90] sm:$0xff]
    %v513 = vld [vmem:[#allocation12 + $0x98] sm:$0xff]
    %v514 = vld [vmem:[#allocation12 + $0xa0] sm:$0xff]
    %v515 = vld [vmem:[#allocation12 + $0xa8] sm:$0xff]
    %v516 = vld [vmem:[#allocation12 + $0xb0] sm:$0xff]
    %v517 = vld [vmem:[#allocation12 + $0xb8] sm:$0xff]
    %v518 = vld [vmem:[#allocation12 + $0xc0] sm:$0xff]
    %v519 = vld [vmem:[#allocation12 + $0xc8] sm:$0xff]
    %v520 = vld [vmem:[#allocation12 + $0xd0] sm:$0xff]
    %v521 = vld [vmem:[#allocation12 + $0xd8] sm:$0xff]
    %v522 = vld [vmem:[#allocation12 + $0xe0] sm:$0xff]
    %v523 = vld [vmem:[#allocation12 + $0xe8] sm:$0xff]
    %v524 = vld [vmem:[#allocation12 + $0xf0] sm:$0xff]
    %v525 = vld [vmem:[#allocation12 + $0xf8] sm:$0xff]
    %v526 = vld [vmem:[%s10] sm:$0x3]
    %v528 = vlaneseq
    %v529 = vshrl.u32 %v528, 7
    %v530 = vsub.s32 0, %v529
    %v531 = vrot.slane %v526, %v530
    %v532 = vlaneseq
    %v533 = vshrl.u32 %v532, 7
    %v534 = vsub.s32 1, %v533
    %v535 = vrot.slane %v526, %v534
    %538 = vmatprep.subr.mxu0 %v495
    %539 = vmatpush1.msra.mxu0 %v494
    %540 = vmatprep.subr.mxu0 %v497
    %541 = vmatpush1.msra.mxu0 %v496
    %542 = vmatprep.subr.mxu0 %v499
    %543 = vmatpush1.msra.mxu0 %v498
    %544 = vmatprep.subr.mxu0 %v501
    %545 = vmatpush1.msra.mxu0 %v500
    %546 = vmatprep.subr.mxu0 %v503
    %547 = vmatpush1.msra.mxu0 %v502
    %548 = vmatprep.subr.mxu0 %v505
    %549 = vmatpush1.msra.mxu0 %v504
    %550 = vmatprep.subr.mxu0 %v507
    %551 = vmatpush1.msra.mxu0 %v506
    %552 = vmatprep.subr.mxu0 %v509
    %553 = vmatpush1.msra.mxu0 %v508
    %554 = vmatprep.subr.mxu0 %v511
    %555 = vmatpush1.msra.mxu0 %v510
    %556 = vmatprep.subr.mxu0 %v513
    %557 = vmatpush1.msra.mxu0 %v512
    %558 = vmatprep.subr.mxu0 %v515
    %559 = vmatpush1.msra.mxu0 %v514
    %560 = vmatprep.subr.mxu0 %v517
    %561 = vmatpush1.msra.mxu0 %v516
    %562 = vmatprep.subr.mxu0 %v519
    %563 = vmatpush1.msra.mxu0 %v518
    %564 = vmatprep.subr.mxu0 %v521
    %565 = vmatpush1.msra.mxu0 %v520
    %566 = vmatprep.subr.mxu0 %v523
    %567 = vmatpush1.msra.mxu0 %v522
    %568 = vmatprep.subr.mxu0 %v525
    %569 = vmatpush1.msra.mxu0 %v524
    %570 = vmatprep.subr.mxu0 0.0
    %571 = vmatpush1.msra.mxu0 0.0
    %572 = vmatprep.subr.mxu0 0.0
    %573 = vmatpush1.msra.mxu0 0.0
    %574 = vmatprep.subr.mxu0 0.0
    %575 = vmatpush1.msra.mxu0 0.0
    %576 = vmatprep.subr.mxu0 0.0
    %577 = vmatpush1.msra.mxu0 0.0
    %578 = vmatprep.subr.mxu0 0.0
    %579 = vmatpush1.msra.mxu0 0.0
    %580 = vmatprep.subr.mxu0 0.0
    %581 = vmatpush1.msra.mxu0 0.0
    %582 = vmatprep.subr.mxu0 0.0
    %583 = vmatpush1.msra.mxu0 0.0
    %584 = vmatprep.subr.mxu0 0.0
    %585 = vmatpush1.msra.mxu0 0.0
    %586 = vmatprep.subr.mxu0 0.0
    %587 = vmatpush1.msra.mxu0 0.0
    %588 = vmatprep.subr.mxu0 0.0
    %589 = vmatpush1.msra.mxu0 0.0
    %590 = vmatprep.subr.mxu0 0.0
    %591 = vmatpush1.msra.mxu0 0.0
    %592 = vmatprep.subr.mxu0 0.0
    %593 = vmatpush1.msra.mxu0 0.0
    %594 = vmatprep.subr.mxu0 0.0
    %595 = vmatpush1.msra.mxu0 0.0
    %596 = vmatprep.subr.mxu0 0.0
    %597 = vmatpush1.msra.mxu0 0.0
    %598 = vmatprep.subr.mxu0 0.0
    %599 = vmatpush1.msra.mxu0 0.0
    %600 = vmatprep.subr.mxu0 0.0
    %601 = vmatpush1.msra.mxu0 0.0
    %602 = vmatprep.mubr.f32.mxu0 0.0
    %603 = vmatmul.mubr.f32.gmra.mrb[0].mxu0 %v493
    %v604 = vpop.f32.mrb[0].mxu0
    %v605 = vadd.f32 %v531, %v604
    %v606 = vpop.f32.mrb[0].mxu0
    %v607 = vadd.f32 %v535, %v606
    %608 = vdwg.mxu0
    %609 = vst [vmem:[#allocation14] sm:$0xff] %v605
    %v610 = vmax.f32 %v607, 0.0
    %611 = vst [vmem:[#allocation15] sm:$0xff] %v610
    %v612 = vld [vmem:[%s7] sm:$0x1]
    %v614 = vlaneseq
    %v615 = vshrl.u32 %v614, 7
    %v616 = vsub.s32 0, %v615
    %v617 = vrot.slane %v612, %v616
    %v619 = vmul.f32 %v493, %v617
    %620 = vadd.xlane.f32.xlu0 %v619
    %v621 = vpop.xlane.xlu0 %620
    %s622 = sld [smem:[#allocation8]]
    %v623 = vstv %s622
    %v624 = vadd.f32 %v621, %v623
    %vm625 = vcmask 7168
    %626 = vst.msk [vmem:[%s11] sm:$0xff] %vm625, %v624
    %627 = vst [vmem:[%s14] sm:$0xff] %v485
    %628 = vst [vmem:[#allocation17] sm:$0xff] %v487
    // Predicated region
    $region102: #{cevncf_forward.1} parent=1 // pred_check
      _
    $region103: #{cevncf_forward.1} parent=1 // pred_check_branch
      %630 = sbr.rel (0) target = $region105
    $region104: #{cevncf_forward.1} parent=1 // pred_region
      _
    $region105: #{cevncf_forward.1} parent=1 // pred_fallthru
      _
    // Predicated region
    $region106: #{cevncf_forward.1} parent=1 // pred_check
      _
    $region107: #{cevncf_forward.1} parent=1 // pred_check_branch
      %632 = sbr.rel (0) target = $region109
    $region108: #{cevncf_forward.1} parent=1 // pred_region
      %s634 = ssub.s32 128, 128
      %635 = vsyncadd [#allocation11], %s634
      %s637 = sshll.u32 [#allocation14], 4
      %s638 = int_to_ptr.vmem [resolvable:$true] %s637
      %640 = dma.vmem_to_hbm [thread:$0]  %s638, 128, %s12, [#allocation11]
    $region109: #{cevncf_forward.1} parent=1 // pred_fallthru
      _
    // Predicated region
    $region110: #{cevncf_forward.1} parent=1 // pred_check
      _
    $region111: #{cevncf_forward.1} parent=1 // pred_check_branch
      %642 = sbr.rel (0) target = $region113
    $region112: #{cevncf_forward.1} parent=1 // pred_region
      %s644 = ssub.s32 128, 128
      %645 = vsyncadd [#allocation16], %s644
      %s647 = sshll.u32 [#allocation15], 4
      %s648 = int_to_ptr.vmem [resolvable:$true] %s647
      %650 = dma.vmem_to_hbm [thread:$0]  %s648, 128, %s13, [#allocation16]
    $region113: #{cevncf_forward.1} parent=1 // pred_fallthru
      _
    // Predicated region
    $region114: #{cevncf_forward.1} parent=1 // pred_check
      _
    $region115: #{cevncf_forward.1} parent=1 // pred_check_branch
      %652 = sbr.rel (0) target = $region117
    $region116: #{cevncf_forward.1} parent=1 // pred_region
      _
    $region117: #{cevncf_forward.1} parent=1 // pred_fallthru
      _
    // Predicated region
    $region118: #{cevncf_forward.1} parent=1 // pred_check
      _
    $region119: #{cevncf_forward.1} parent=1 // pred_check_branch
      %654 = sbr.rel (0) target = $region121
    $region120: #{cevncf_forward.1} parent=1 // pred_region
      %s656 = ssub.s32 128, 128
      %657 = vsyncadd [#allocation16], %s656
      %s659 = sshll.u32 [#allocation17], 4
      %s660 = int_to_ptr.vmem [resolvable:$true] %s659
      %662 = dma.vmem_to_hbm [thread:$0]  %s660, 128, %s15, [#allocation16]
    $region121: #{cevncf_forward.1} parent=1 // pred_fallthru
      _
    // Predicated region
    $region122: #{cevncf_forward.1} parent=1 // pred_check
      _
    $region123: #{cevncf_forward.1} parent=1 // pred_check_branch
      %664 = sbr.rel (0) target = $region125
    $region124: #{cevncf_forward.1} parent=1 // pred_region
      _
    $region125: #{cevncf_forward.1} parent=1 // pred_fallthru
      _
    // Predicated region
    $region126: #{cevncf_forward.1} parent=1 // pred_check
      _
    $region127: #{cevncf_forward.1} parent=1 // pred_check_branch
      %666 = sbr.rel (0) target = $region129
    $region128: #{cevncf_forward.1} parent=1 // pred_region
      %667 = dma.done [#allocation11], 128
    $region129: #{cevncf_forward.1} parent=1 // pred_fallthru
      _
    // Predicated region
    $region130: #{cevncf_forward.1} parent=1 // pred_check
      _
    $region131: #{cevncf_forward.1} parent=1 // pred_check_branch
      %669 = sbr.rel (0) target = $region133
    $region132: #{cevncf_forward.1} parent=1 // pred_region
      %670 = dma.done [#allocation16], 128
    $region133: #{cevncf_forward.1} parent=1 // pred_fallthru
      _
    // Predicated region
    $region134: #{cevncf_forward.1} parent=1 // pred_check
      _
    $region135: #{cevncf_forward.1} parent=1 // pred_check_branch
      %672 = sbr.rel (0) target = $region137
    $region136: #{cevncf_forward.1} parent=1 // pred_region
      _
    $region137: #{cevncf_forward.1} parent=1 // pred_fallthru
      _
    // Predicated region
    $region138: #{cevncf_forward.1} parent=1 // pred_check
      _
    $region139: #{cevncf_forward.1} parent=1 // pred_check_branch
      %674 = sbr.rel (0) target = $region141
    $region140: #{cevncf_forward.1} parent=1 // pred_region
      %675 = dma.done [#allocation16], 128
    $region141: #{cevncf_forward.1} parent=1 // pred_fallthru
      _
    %676 = vsyncpa [#allocation10], 1
    %677 = vsyncpa [#allocation13], 1
    %678 = vsyncpa [#allocation11], 1
    %679 = vsyncpa [#allocation16], 1
  %680 = vsyncmov [#allocation4]
  %s681 = vpop.sfrf %680
  %p682 = scmp.eq.s32.totalorder %s681, 0
  %p683 = pneg %p682
  %685 = shalt.err (%p683)
  %s686 = scalar_lea.sflag [#allocation4], 1
  %687 = vsyncmov %s686
  %s688 = vpop.sfrf %687
  %p689 = scmp.eq.s32.totalorder %s688, 0
  %p690 = pneg %p689
  %692 = shalt.err (%p690)
  %s693 = scalar_lea.sflag [#allocation4], 2
  %694 = vsyncmov %s693
  %s695 = vpop.sfrf %694
  %p696 = scmp.eq.s32.totalorder %s695, 0
  %p697 = pneg %p696
  %699 = shalt.err (%p697)
  %s700 = scalar_lea.sflag [#allocation4], 3
  %701 = vsyncmov %s700
  %s702 = vpop.sfrf %701
  %p703 = scmp.eq.s32.totalorder %s702, 0
  %p704 = pneg %p703
  %706 = shalt.err (%p704)
  %s707 = scalar_lea.sflag [#allocation4], 4
  %708 = vsyncmov %s707
  %s709 = vpop.sfrf %708
  %p710 = scmp.eq.s32.totalorder %s709, 0
  %p711 = pneg %p710
  %713 = shalt.err (%p711)
  %s714 = scalar_lea.sflag [#allocation4], 5
  %715 = vsyncmov %s714
  %s716 = vpop.sfrf %715
  %p717 = scmp.eq.s32.totalorder %s716, 0
  %p718 = pneg %p717
  %720 = shalt.err (%p718)
  %s721 = scalar_lea.sflag [#allocation4], 6
  %722 = vsyncmov %s721
  %s723 = vpop.sfrf %722
  %p724 = scmp.eq.s32.totalorder %s723, 0
  %p725 = pneg %p724
  %727 = shalt.err (%p725)
  %s728 = scalar_lea.sflag [#allocation4], 7
  %729 = vsyncmov %s728
  %s730 = vpop.sfrf %729
  %p731 = scmp.eq.s32.totalorder %s730, 0
  %p732 = pneg %p731
  %734 = shalt.err (%p732)
  %s735 = scalar_lea.sflag [#allocation4], 8
  %736 = vsyncmov %s735
  %s737 = vpop.sfrf %736
  %p738 = scmp.eq.s32.totalorder %s737, 0
  %p739 = pneg %p738
  %741 = shalt.err (%p739)
  %s742 = scalar_lea.sflag [#allocation4], 9
  %743 = vsyncmov %s742
  %s744 = vpop.sfrf %743
  %p745 = scmp.eq.s32.totalorder %s744, 0
  %p746 = pneg %p745
  %748 = shalt.err (%p746)
  %s749 = scalar_lea.sflag [#allocation4], 10
  %750 = vsyncmov %s749
  %s751 = vpop.sfrf %750
  %p752 = scmp.eq.s32.totalorder %s751, 0
  %p753 = pneg %p752
  %755 = shalt.err (%p753)
  %s756 = scalar_lea.sflag [#allocation4], 11
  %757 = vsyncmov %s756
  %s758 = vpop.sfrf %757
  %p759 = scmp.eq.s32.totalorder %s758, 0
  %p760 = pneg %p759
  %762 = shalt.err (%p760)
  %s763 = scalar_lea.sflag [#allocation4], 12
  %764 = vsyncmov %s763
  %s765 = vpop.sfrf %764
  %p766 = scmp.eq.s32.totalorder %s765, 0
  %p767 = pneg %p766
  %769 = shalt.err (%p767)
  %s770 = scalar_lea.sflag [#allocation4], 13
  %771 = vsyncmov %s770
  %s772 = vpop.sfrf %771
  %p773 = scmp.eq.s32.totalorder %s772, 0
  %p774 = pneg %p773
  %776 = shalt.err (%p774)
  %s777 = scalar_lea.sflag [#allocation4], 14
  %778 = vsyncmov %s777
  %s779 = vpop.sfrf %778
  %p780 = scmp.eq.s32.totalorder %s779, 0
  %p781 = pneg %p780
  %783 = shalt.err (%p781)
  %s784 = scalar_lea.sflag [#allocation4], 15
  %785 = vsyncmov %s784
  %s786 = vpop.sfrf %785
  %p787 = scmp.eq.s32.totalorder %s786, 0
  %p788 = pneg %p787
  %790 = shalt.err (%p788)

</llo_original>
